<compile_context>
chip_gen: v7x
topology: tpu7x:2x2x1
jax: 0.10.0
libtpu: 0.0.40
codegen_flags: <defaults>
</compile_context>

<pallas_src>
import functools

import jax
import jax.numpy as jnp
from jax import lax
from jax.experimental import pallas as pl
from jax.experimental.pallas import tpu as pltpu

C_OUT = 64
BN_EPS = 1e-6            # module spec: nn.BatchNorm1d(64, eps=1e-06)
POOL_K, POOL_S = 8, 2    # module spec: nn.MaxPool1d(kernel_size=8, stride=2)
LP = 8                   # left-pad rows in VMEM slabs (>= conv pad, 8-aligned writes)


def _round_up(x, m):
    return ((x + m - 1) // m) * m


def _block_geo(l_in, K, stride, pad):
    """Geometry of one conv block (blocks 2-4) inside the fused kernel.

    Per-sample padded-input slab has `slab = stride * m` rows (interior at rows
    [LP, LP+l_in)), so a single strided slice per tap k,
        pad[pl.ds(start + k, TB*m, stride=stride)],
    yields the tap-k rows of every sample in the tile back-to-back, and the
    block reduces to K accumulated (TB*m, 64) @ (64, 64) matmuls.
    Rows j >= l_out of each sample's m-row result are garbage and are never
    copied forward / read by the wrapper.
    """
    assert pad <= LP
    l_out = (l_in + 2 * pad - K) // stride + 1
    m = _round_up(max(l_out, -(-(LP + l_in) // stride)), 8)
    slab = stride * m
    start = LP - pad                                   # row of padded position 0
    tail = max(_round_up(start + K - stride, 8), LP)   # keeps last strided read in-bounds
    return dict(K=K, stride=stride, pad=pad, l_in=l_in, l_out=l_out,
                start=start, m=m, slab=slab, tail=tail)


# ---------------------------------------------------------------------------
# Fused Pallas kernel (one batch tile of TB samples per grid step)
# ---------------------------------------------------------------------------
def fused_convlayer_kernel(p1_ref, w1_ref, w2_ref, w3_ref, w4_ref,
                           scale_ref, shift_ref, o_ref,
                           c1_scr, pad2, pad3, pad4,
                           *, tb, l1, l1p, g2, g3, g4):
    # ---- zero ONLY the never-written pad rows (8-row head + inter-sample gaps).
    # Interiors are overwritten below; tail rows feed only discarded output rows.
    def zero_pads(ref, g):
        slab, l_in = g['slab'], g['l_in']
        ref[0:LP, :] = jnp.zeros((LP, C_OUT), jnp.float32)
        gap = slab - l_in
        for b in range(tb):
            s = b * slab + LP + l_in
            ref[s:s + gap, :] = jnp.zeros((gap, C_OUT), jnp.float32)

    zero_pads(pad2, g2)
    zero_pads(pad3, g3)
    zero_pads(pad4, g4)

    # ---------------- block1: conv1(K=9,s=2,p=4) + BN -----------------------
    # One batch-tile-folded matmul on wrapper-side im2col patches.
    y1 = jnp.dot(p1_ref[...], w1_ref[...], preferred_element_type=jnp.float32)
    y1 = y1 * scale_ref[0:1, :] + shift_ref[0:1, :]

    # MaxPool1d(8, 2): window max via 3 roll+max doubling steps (VALU/XLU slots,
    # off the saturated vld/vst path); w8[i] = max(y1[i-7 .. i]).  The gathered
    # rows (offsets 7, 9, ..., l1-1 per sample) never cross a sample boundary.
    w8 = jnp.maximum(y1, pltpu.roll(y1, 1, axis=0))
    w8 = jnp.maximum(w8, pltpu.roll(w8, 2, axis=0))
    w8 = jnp.maximum(w8, pltpu.roll(w8, 4, axis=0))
    c1_scr[...] = w8
    for b in range(tb):               # TB <= 8: unrolled; use fori_loop for big tiles
        pooled = c1_scr[pl.ds(b * l1 + POOL_K - 1, l1p, stride=POOL_S), :]
        d = b * g2['slab'] + LP
        pad2[d:d + l1p, :] = jnp.tanh(pooled)

    # ---------------- blocks 2-4: conv + BN + Tanh (no patch buffers) --------
    def conv_block(idx, pad_ref, w_ref, g):
        acc = jnp.zeros((tb * g['m'], C_OUT), jnp.float32)
        for k in range(g['K']):
            lhs = pad_ref[pl.ds(g['start'] + k, tb * g['m'], stride=g['stride']), :]
            acc = acc + jnp.dot(lhs, w_ref[k * C_OUT:(k + 1) * C_OUT, :],
                                preferred_element_type=jnp.float32)
        return jnp.tanh(acc * scale_ref[idx:idx + 1, :] + shift_ref[idx:idx + 1, :])

    z2 = conv_block(1, pad2, w2_ref, g2)          # (tb*m2, 64)
    for b in range(tb):
        d = b * g3['slab'] + LP
        pad3[d:d + g2['l_out'], :] = z2[b * g2['m']:b * g2['m'] + g2['l_out'], :]

    z3 = conv_block(2, pad3, w3_ref, g3)
    for b in range(tb):
        d = b * g4['slab'] + LP
        pad4[d:d + g3['l_out'], :] = z3[b * g3['m']:b * g3['m'] + g3['l_out'], :]

    z4 = conv_block(3, pad4, w4_ref, g4)          # (tb*m4, 64)
    # Final ReLU (Dropout = identity).  Single bulk store; per-sample rows
    # >= l_out4 are garbage and are sliced off in the wrapper.
    o_ref[...] = jnp.maximum(z4, 0.0)


# ---------------------------------------------------------------------------
# Wrapper: tiny input-side prep + one pallas_call (grid over batch tiles)
# ---------------------------------------------------------------------------
def _im2col_input(x_nlc, K, stride, pad, row_align=8):
    """im2col of the (tiny) network input, batch folded into rows (ordinary XLA)."""
    B, L, c_in = x_nlc.shape
    l_out = (L + 2 * pad - K) // stride + 1
    xp = jnp.pad(x_nlc, ((0, 0), (pad, pad), (0, 0)))
    taps = [xp[:, k:k + stride * (l_out - 1) + 1:stride, :] for k in range(K)]
    p = jnp.concatenate(taps, axis=-1).reshape(B * l_out, K * c_in)
    kc = _round_up(K * c_in, row_align)
    if kc != K * c_in:
        p = jnp.pad(p, ((0, 0), (0, kc - K * c_in)))
    return p, l_out, kc


def conv_layer_forward(x_ncw, params, tb=None):
    B, c_in, L = x_ncw.shape
    l1 = (L + 2 * 4 - 9) // 2 + 1                   # conv1 output length
    if tb is None:
        tb = min(8, B)                              # batch-tile size (VMEM ~30 KiB/sample)
    nt = -(-B // tb)
    if nt > 1 and (tb * l1) % 8 != 0:               # keep BlockSpec rows 8-aligned
        tb, nt = B, 1
    B_pad = nt * tb

    x_nlc = jnp.transpose(x_ncw, (0, 2, 1))         # NCW -> (B, L, C)
    if B_pad != B:
        x_nlc = jnp.pad(x_nlc, ((0, B_pad - B), (0, 0), (0, 0)))

    p1, l1, kc1 = _im2col_input(x_nlc, K=9, stride=2, pad=4)
    l1p = (l1 - POOL_K) // POOL_S + 1               # after MaxPool1d(8, 2)
    g2 = _block_geo(l1p, K=5, stride=2, pad=2)
    g3 = _block_geo(g2['l_out'], K=5, stride=2, pad=2)
    g4 = _block_geo(g3['l_out'], K=3, stride=2, pad=1)
    L4, m4 = g4['l_out'], g4['m']

    w1 = params['b1']['w2d']
    if w1.shape[0] != kc1:                          # align contraction rows to 8
        w1 = jnp.pad(w1, ((0, kc1 - w1.shape[0]), (0, 0)))
    w2, w3, w4 = (params[k]['w2d'] for k in ('b2', 'b3', 'b4'))
    scales = jnp.concatenate(
        [params[k]['scale'] for k in ('b1', 'b2', 'b3', 'b4')], axis=0)
    shifts = jnp.concatenate(
        [params[k]['shift'] for k in ('b1', 'b2', 'b3', 'b4')], axis=0)

    kern = functools.partial(fused_convlayer_kernel, tb=tb, l1=l1, l1p=l1p,
                             g2=g2, g3=g3, g4=g4)

    out_full = pl.pallas_call(
        kern,
        out_shape=jax.ShapeDtypeStruct((B_pad * m4, C_OUT), jnp.float32),
        grid_spec=pltpu.PrefetchScalarGridSpec(
            num_scalar_prefetch=0,
            grid=(nt,),
            in_specs=[
                pl.BlockSpec((tb * l1, kc1), lambda i: (i, 0)),
                pl.BlockSpec(w1.shape, lambda i: (0, 0)),
                pl.BlockSpec(w2.shape, lambda i: (0, 0)),
                pl.BlockSpec(w3.shape, lambda i: (0, 0)),
                pl.BlockSpec(w4.shape, lambda i: (0, 0)),
                pl.BlockSpec(scales.shape, lambda i: (0, 0)),
                pl.BlockSpec(shifts.shape, lambda i: (0, 0)),
            ],
            out_specs=pl.BlockSpec((tb * m4, C_OUT), lambda i: (i, 0)),
            scratch_shapes=[
                pltpu.VMEM((tb * l1, C_OUT), jnp.float32),                      # conv1+BN window-max
                pltpu.VMEM((tb * g2['slab'] + g2['tail'], C_OUT), jnp.float32),  # padded in2
                pltpu.VMEM((tb * g3['slab'] + g3['tail'], C_OUT), jnp.float32),  # padded in3
                pltpu.VMEM((tb * g4['slab'] + g4['tail'], C_OUT), jnp.float32),  # padded in4
            ]),
        compiler_params=pltpu.CompilerParams(
            dimension_semantics=("parallel",),       # megacore on v7x
            vmem_limit_bytes=32 * 1024 * 1024),
    )(p1, w1, w2, w3, w4, scales, shifts)

    # Kernel output is the (B_pad, m4, 64) slab; nn.Flatten on NCW wants
    # out[b, c*L4 + l].  Slice off padded samples / garbage rows and transpose.
    out = out_full.reshape(B_pad, m4, C_OUT)[:B, :L4, :]
    return jnp.transpose(out, (0, 2, 1)).reshape(B, C_OUT * L4)


# ---------------------------------------------------------------------------
# Parameter construction (deterministic, synthetic)
# ---------------------------------------------------------------------------
def _fold_bn(bias, gamma, beta, mean, var, eps=BN_EPS):
    s = gamma / jnp.sqrt(var + eps)
    scale = s
    shift = (bias - mean) * s + beta
    return scale.reshape(1, C_OUT), shift.reshape(1, C_OUT)


def make_params(key, c_in_first):
    def block(k, c_in, c_out, K):
        ks = jax.random.split(k, 6)
        w = jax.random.normal(ks[0], (c_out, c_in, K), jnp.float32) / jnp.sqrt(c_in * K)
        b = 0.05 * jax.random.normal(ks[1], (c_out,), jnp.float32)
        gamma = 1.0 + 0.1 * jax.random.normal(ks[2], (c_out,), jnp.float32)
        beta = 0.1 * jax.random.normal(ks[3], (c_out,), jnp.float32)
        mean = 0.1 * jax.random.normal(ks[4], (c_out,), jnp.float32)
        var = 1.0 + 0.1 * jax.random.uniform(ks[5], (c_out,), jnp.float32)
        scale, shift = _fold_bn(b, gamma, beta, mean, var)
        # (out, in, K) -> (K*in, out) so contraction row k*in + i matches the
        # tap/channel ordering used by the kernel.
        w2d = jnp.transpose(w, (2, 1, 0)).reshape(K * c_in, c_out)
        return dict(w=w, b=b, gamma=gamma, beta=beta, mean=mean, var=var,
                    w2d=w2d, scale=scale, shift=shift)

    k1, k2, k3, k4 = jax.random.split(key, 4)
    return dict(b1=block(k1, c_in_first, C_OUT, 9),
                b2=block(k2, C_OUT, C_OUT, 5),
                b3=block(k3, C_OUT, C_OUT, 5),
                b4=block(k4, C_OUT, C_OUT, 3))


# ---------------------------------------------------------------------------
# Pure-JAX reference (eval-mode semantics)
# ---------------------------------------------------------------------------
def reference_forward(x_ncw, params):
    def conv_bn(x, p, stride, pad):
        y = lax.conv_general_dilated(x, p["w"], (stride,), [(pad, pad)],
                                     dimension_numbers=("NCH", "OIH", "NCH"))
        y = y + p["b"][None, :, None]
        return ((y - p["mean"][None, :, None])
                / jnp.sqrt(p["var"][None, :, None] + BN_EPS)
                * p["gamma"][None, :, None] + p["beta"][None, :, None])

    y = conv_bn(x_ncw, params["b1"], 2, 4)
    y = lax.reduce_window(y, -jnp.inf, lax.max, (1, 1, 8), (1, 1, 2), "VALID")
    y = jnp.tanh(y)
    y = jnp.tanh(conv_bn(y, params["b2"], 2, 2))
    y = jnp.tanh(conv_bn(y, params["b3"], 2, 2))
    y = jnp.tanh(conv_bn(y, params["b4"], 2, 1))
    y = jnp.maximum(y, 0.0)
    return y.reshape(y.shape[0], -1)


# ---------------------------------------------------------------------------
if __name__ == "__main__":
    import numpy as np

    key = jax.random.PRNGKey(0)
    kx, kp = jax.random.split(key)

    B, C_IN, L = 4, 4, 64
    x = jax.random.normal(kx, (B, C_IN, L), jnp.float32)       # NCW like PyTorch
    params = make_params(kp, C_IN)

    fwd = jax.jit(functools.partial(conv_layer_forward, tb=2))  # grid=(2,) batch tiles
    out = jax.block_until_ready(fwd(x, params))

    ref = reference_forward(x, params)
    np.testing.assert_allclose(np.asarray(out), np.asarray(ref),
                               atol=2e-3, rtol=2e-3)
    assert out.shape == (B, C_OUT * 2)  # 64 channels * final length 2
    print("KERNEL_OK")
</pallas_src>

<mosaic_0001>
module attributes {stable_mosaic.version = 11 : i64} {
  func.func @fused_convlayer_kernel(%arg0: i32, %arg1: memref<64x40xf32, #tpu.memory_space<vmem>>, %arg2: memref<40x64xf32, #tpu.memory_space<vmem>>, %arg3: memref<320x64xf32, #tpu.memory_space<vmem>>, %arg4: memref<320x64xf32, #tpu.memory_space<vmem>>, %arg5: memref<192x64xf32, #tpu.memory_space<vmem>>, %arg6: memref<4x64xf32, #tpu.memory_space<vmem>>, %arg7: memref<4x64xf32, #tpu.memory_space<vmem>>, %arg8: memref<16x64xf32, #tpu.memory_space<vmem>>, %arg9: memref<64x64xf32, #tpu.memory_space<vmem>>, %arg10: memref<80x64xf32, #tpu.memory_space<vmem>>, %arg11: memref<48x64xf32, #tpu.memory_space<vmem>>, %arg12: memref<40x64xf32, #tpu.memory_space<vmem>>) attributes {dimension_semantics = [#tpu.dimension_semantics<parallel>], iteration_bounds = array<i64: 2>, scalar_prefetch = 0 : i64, scratch_operands = 4 : i64, tpu.core_type = #tpu.core_type<tc>, window_params = [{transform_indices = @transform_0, window_bounds = array<i64: 64, 40>}, {pipeline_mode = #tpu.pipeline_mode<synchronous>, transform_indices = @transform_1, window_bounds = array<i64: 40, 64>}, {pipeline_mode = #tpu.pipeline_mode<synchronous>, transform_indices = @transform_2, window_bounds = array<i64: 320, 64>}, {pipeline_mode = #tpu.pipeline_mode<synchronous>, transform_indices = @transform_3, window_bounds = array<i64: 320, 64>}, {pipeline_mode = #tpu.pipeline_mode<synchronous>, transform_indices = @transform_4, window_bounds = array<i64: 192, 64>}, {pipeline_mode = #tpu.pipeline_mode<synchronous>, transform_indices = @transform_5, window_bounds = array<i64: 4, 64>}, {pipeline_mode = #tpu.pipeline_mode<synchronous>, transform_indices = @transform_6, window_bounds = array<i64: 4, 64>}, {transform_indices = @transform_7, window_bounds = array<i64: 16, 64>}]} {
    %cst = arith.constant 0.000000e+00 : f32
    %0 = vector.broadcast %cst : f32 to vector<8x64xf32>
    %c0 = arith.constant 0 : index
    %c0_0 = arith.constant 0 : index
    %1 = vector.load %arg10[%c0, %c0_0] : memref<80x64xf32, #tpu.memory_space<vmem>>, vector<8x64xf32>
    tpu.vector_store %arg10[%c0, %c0_0], %0 {strides = array<i32>} : memref<80x64xf32, #tpu.memory_space<vmem>>, vector<8x64xf32>,
    %cst_1 = arith.constant 0.000000e+00 : f32
    %2 = vector.broadcast %cst_1 : f32 to vector<19x64xf32>
    %c21 = arith.constant 21 : index
    %c0_2 = arith.constant 0 : index
    %3 = vector.load %arg10[%c21, %c0_2] : memref<80x64xf32, #tpu.memory_space<vmem>>, vector<19x64xf32>
    tpu.vector_store %arg10[%c21, %c0_2], %2 {strides = array<i32>} : memref<80x64xf32, #tpu.memory_space<vmem>>, vector<19x64xf32>,
    %cst_3 = arith.constant 0.000000e+00 : f32
    %4 = vector.broadcast %cst_3 : f32 to vector<19x64xf32>
    %c53 = arith.constant 53 : index
    %c0_4 = arith.constant 0 : index
    %5 = vector.load %arg10[%c53, %c0_4] : memref<80x64xf32, #tpu.memory_space<vmem>>, vector<19x64xf32>
    tpu.vector_store %arg10[%c53, %c0_4], %4 {strides = array<i32>} : memref<80x64xf32, #tpu.memory_space<vmem>>, vector<19x64xf32>,
    %cst_5 = arith.constant 0.000000e+00 : f32
    %6 = vector.broadcast %cst_5 : f32 to vector<8x64xf32>
    %c0_6 = arith.constant 0 : index
    %c0_7 = arith.constant 0 : index
    %7 = vector.load %arg11[%c0_6, %c0_7] : memref<48x64xf32, #tpu.memory_space<vmem>>, vector<8x64xf32>
    tpu.vector_store %arg11[%c0_6, %c0_7], %6 {strides = array<i32>} : memref<48x64xf32, #tpu.memory_space<vmem>>, vector<8x64xf32>,
    %cst_8 = arith.constant 0.000000e+00 : f32
    %8 = vector.broadcast %cst_8 : f32 to vector<9x64xf32>
    %c15 = arith.constant 15 : index
    %c0_9 = arith.constant 0 : index
    %9 = vector.load %arg11[%c15, %c0_9] : memref<48x64xf32, #tpu.memory_space<vmem>>, vector<9x64xf32>
    tpu.vector_store %arg11[%c15, %c0_9], %8 {strides = array<i32>} : memref<48x64xf32, #tpu.memory_space<vmem>>, vector<9x64xf32>,
    %cst_10 = arith.constant 0.000000e+00 : f32
    %10 = vector.broadcast %cst_10 : f32 to vector<9x64xf32>
    %c31 = arith.constant 31 : index
    %c0_11 = arith.constant 0 : index
    %11 = vector.load %arg11[%c31, %c0_11] : memref<48x64xf32, #tpu.memory_space<vmem>>, vector<9x64xf32>
    tpu.vector_store %arg11[%c31, %c0_11], %10 {strides = array<i32>} : memref<48x64xf32, #tpu.memory_space<vmem>>, vector<9x64xf32>,
    %cst_12 = arith.constant 0.000000e+00 : f32
    %12 = vector.broadcast %cst_12 : f32 to vector<8x64xf32>
    %c0_13 = arith.constant 0 : index
    %c0_14 = arith.constant 0 : index
    %13 = vector.load %arg12[%c0_13, %c0_14] : memref<40x64xf32, #tpu.memory_space<vmem>>, vector<8x64xf32>
    tpu.vector_store %arg12[%c0_13, %c0_14], %12 {strides = array<i32>} : memref<40x64xf32, #tpu.memory_space<vmem>>, vector<8x64xf32>,
    %cst_15 = arith.constant 0.000000e+00 : f32
    %14 = vector.broadcast %cst_15 : f32 to vector<12x64xf32>
    %c12 = arith.constant 12 : index
    %c0_16 = arith.constant 0 : index
    %15 = vector.load %arg12[%c12, %c0_16] : memref<40x64xf32, #tpu.memory_space<vmem>>, vector<12x64xf32>
    tpu.vector_store %arg12[%c12, %c0_16], %14 {strides = array<i32>} : memref<40x64xf32, #tpu.memory_space<vmem>>, vector<12x64xf32>,
    %cst_17 = arith.constant 0.000000e+00 : f32
    %16 = vector.broadcast %cst_17 : f32 to vector<12x64xf32>
    %c28 = arith.constant 28 : index
    %c0_18 = arith.constant 0 : index
    %17 = vector.load %arg12[%c28, %c0_18] : memref<40x64xf32, #tpu.memory_space<vmem>>, vector<12x64xf32>
    tpu.vector_store %arg12[%c28, %c0_18], %16 {strides = array<i32>} : memref<40x64xf32, #tpu.memory_space<vmem>>, vector<12x64xf32>,
    %c0_19 = arith.constant 0 : index
    %c0_20 = arith.constant 0 : index
    %18 = vector.load %arg1[%c0_19, %c0_20] : memref<64x40xf32, #tpu.memory_space<vmem>>, vector<64x40xf32>
    %c0_21 = arith.constant 0 : index
    %c0_22 = arith.constant 0 : index
    %19 = vector.load %arg2[%c0_21, %c0_22] : memref<40x64xf32, #tpu.memory_space<vmem>>, vector<40x64xf32>
    %cst_23 = arith.constant dense<0.000000e+00> : vector<64x64xf32>
    %20 = tpu.matmul %18, %19, %cst_23 {dimension_numbers = #tpu.dot_dimension_numbers<[1], [0], [0], [1], [0, 0, 1, 1], [], []>} : vector<64x40xf32>, vector<40x64xf32>, vector<64x64xf32> -> vector<64x64xf32>
    %c0_24 = arith.constant 0 : index
    %c0_25 = arith.constant 0 : index
    %21 = vector.load %arg6[%c0_24, %c0_25] : memref<4x64xf32, #tpu.memory_space<vmem>>, vector<1x64xf32>
    %22 = vector.broadcast %21 : vector<1x64xf32> to vector<64x64xf32>
    %23 = arith.mulf %20, %22 : vector<64x64xf32>
    %c0_26 = arith.constant 0 : index
    %c0_27 = arith.constant 0 : index
    %24 = vector.load %arg7[%c0_26, %c0_27] : memref<4x64xf32, #tpu.memory_space<vmem>>, vector<1x64xf32>
    %25 = vector.broadcast %24 : vector<1x64xf32> to vector<64x64xf32>
    %26 = arith.addf %23, %25 : vector<64x64xf32>
    %c1_i32 = arith.constant 1 : i32
    %27 = tpu.dynamic_rotate %26 by %c1_i32 dim 0 : vector<64x64xf32>, i32 -> vector<64x64xf32>
    %28 = arith.maximumf %26, %27 : vector<64x64xf32>
    %c2_i32 = arith.constant 2 : i32
    %29 = tpu.dynamic_rotate %28 by %c2_i32 dim 0 : vector<64x64xf32>, i32 -> vector<64x64xf32>
    %30 = arith.maximumf %28, %29 : vector<64x64xf32>
    %c4_i32 = arith.constant 4 : i32
    %31 = tpu.dynamic_rotate %30 by %c4_i32 dim 0 : vector<64x64xf32>, i32 -> vector<64x64xf32>
    %32 = arith.maximumf %30, %31 : vector<64x64xf32>
    %c0_28 = arith.constant 0 : index
    %c0_29 = arith.constant 0 : index
    %33 = vector.load %arg9[%c0_28, %c0_29] : memref<64x64xf32, #tpu.memory_space<vmem>>, vector<64x64xf32>
    tpu.vector_store %arg9[%c0_28, %c0_29], %32 {strides = array<i32>} : memref<64x64xf32, #tpu.memory_space<vmem>>, vector<64x64xf32>,
    %c7 = arith.constant 7 : index
    %c0_30 = arith.constant 0 : index
    %34 = tpu.strided_load %arg9[%c7, %c0_30] {strides = array<i32: 2, 1>} : memref<64x64xf32, #tpu.memory_space<vmem>>, vector<13x64xf32>
    %35 = math.tanh %34 : vector<13x64xf32>
    %c8 = arith.constant 8 : index
    %c0_31 = arith.constant 0 : index
    %36 = vector.load %arg10[%c8, %c0_31] : memref<80x64xf32, #tpu.memory_space<vmem>>, vector<13x64xf32>
    tpu.vector_store %arg10[%c8, %c0_31], %35 {strides = array<i32>} : memref<80x64xf32, #tpu.memory_space<vmem>>, vector<13x64xf32>,
    %c39 = arith.constant 39 : index
    %c0_32 = arith.constant 0 : index
    %37 = tpu.strided_load %arg9[%c39, %c0_32] {strides = array<i32: 2, 1>} : memref<64x64xf32, #tpu.memory_space<vmem>>, vector<13x64xf32>
    %38 = math.tanh %37 : vector<13x64xf32>
    %c40 = arith.constant 40 : index
    %c0_33 = arith.constant 0 : index
    %39 = vector.load %arg10[%c40, %c0_33] : memref<80x64xf32, #tpu.memory_space<vmem>>, vector<13x64xf32>
    tpu.vector_store %arg10[%c40, %c0_33], %38 {strides = array<i32>} : memref<80x64xf32, #tpu.memory_space<vmem>>, vector<13x64xf32>,
    %cst_34 = arith.constant 0.000000e+00 : f32
    %40 = vector.broadcast %cst_34 : f32 to vector<32x64xf32>
    %c6 = arith.constant 6 : index
    %c0_35 = arith.constant 0 : index
    %41 = tpu.strided_load %arg10[%c6, %c0_35] {strides = array<i32: 2, 1>} : memref<80x64xf32, #tpu.memory_space<vmem>>, vector<32x64xf32>
    %c0_36 = arith.constant 0 : index
    %c0_37 = arith.constant 0 : index
    %42 = vector.load %arg3[%c0_36, %c0_37] : memref<320x64xf32, #tpu.memory_space<vmem>>, vector<64x64xf32>
    %cst_38 = arith.constant dense<0.000000e+00> : vector<32x64xf32>
    %43 = tpu.matmul %41, %42, %cst_38 {dimension_numbers = #tpu.dot_dimension_numbers<[1], [0], [0], [1], [0, 0, 1, 1], [], []>} : vector<32x64xf32>, vector<64x64xf32>, vector<32x64xf32> -> vector<32x64xf32>
    %44 = arith.addf %40, %43 : vector<32x64xf32>
    %c7_39 = arith.constant 7 : index
    %c0_40 = arith.constant 0 : index
    %45 = tpu.strided_load %arg10[%c7_39, %c0_40] {strides = array<i32: 2, 1>} : memref<80x64xf32, #tpu.memory_space<vmem>>, vector<32x64xf32>
    %c64 = arith.constant 64 : index
    %c0_41 = arith.constant 0 : index
    %46 = vector.load %arg3[%c64, %c0_41] : memref<320x64xf32, #tpu.memory_space<vmem>>, vector<64x64xf32>
    %cst_42 = arith.constant dense<0.000000e+00> : vector<32x64xf32>
    %47 = tpu.matmul %45, %46, %cst_42 {dimension_numbers = #tpu.dot_dimension_numbers<[1], [0], [0], [1], [0, 0, 1, 1], [], []>} : vector<32x64xf32>, vector<64x64xf32>, vector<32x64xf32> -> vector<32x64xf32>
    %48 = arith.addf %44, %47 : vector<32x64xf32>
    %c8_43 = arith.constant 8 : index
    %c0_44 = arith.constant 0 : index
    %49 = tpu.strided_load %arg10[%c8_43, %c0_44] {strides = array<i32: 2, 1>} : memref<80x64xf32, #tpu.memory_space<vmem>>, vector<32x64xf32>
    %c128 = arith.constant 128 : index
    %c0_45 = arith.constant 0 : index
    %50 = vector.load %arg3[%c128, %c0_45] : memref<320x64xf32, #tpu.memory_space<vmem>>, vector<64x64xf32>
    %cst_46 = arith.constant dense<0.000000e+00> : vector<32x64xf32>
    %51 = tpu.matmul %49, %50, %cst_46 {dimension_numbers = #tpu.dot_dimension_numbers<[1], [0], [0], [1], [0, 0, 1, 1], [], []>} : vector<32x64xf32>, vector<64x64xf32>, vector<32x64xf32> -> vector<32x64xf32>
    %52 = arith.addf %48, %51 : vector<32x64xf32>
    %c9 = arith.constant 9 : index
    %c0_47 = arith.constant 0 : index
    %53 = tpu.strided_load %arg10[%c9, %c0_47] {strides = array<i32: 2, 1>} : memref<80x64xf32, #tpu.memory_space<vmem>>, vector<32x64xf32>
    %c192 = arith.constant 192 : index
    %c0_48 = arith.constant 0 : index
    %54 = vector.load %arg3[%c192, %c0_48] : memref<320x64xf32, #tpu.memory_space<vmem>>, vector<64x64xf32>
    %cst_49 = arith.constant dense<0.000000e+00> : vector<32x64xf32>
    %55 = tpu.matmul %53, %54, %cst_49 {dimension_numbers = #tpu.dot_dimension_numbers<[1], [0], [0], [1], [0, 0, 1, 1], [], []>} : vector<32x64xf32>, vector<64x64xf32>, vector<32x64xf32> -> vector<32x64xf32>
    %56 = arith.addf %52, %55 : vector<32x64xf32>
    %c10 = arith.constant 10 : index
    %c0_50 = arith.constant 0 : index
    %57 = tpu.strided_load %arg10[%c10, %c0_50] {strides = array<i32: 2, 1>} : memref<80x64xf32, #tpu.memory_space<vmem>>, vector<32x64xf32>
    %c256 = arith.constant 256 : index
    %c0_51 = arith.constant 0 : index
    %58 = vector.load %arg3[%c256, %c0_51] : memref<320x64xf32, #tpu.memory_space<vmem>>, vector<64x64xf32>
    %cst_52 = arith.constant dense<0.000000e+00> : vector<32x64xf32>
    %59 = tpu.matmul %57, %58, %cst_52 {dimension_numbers = #tpu.dot_dimension_numbers<[1], [0], [0], [1], [0, 0, 1, 1], [], []>} : vector<32x64xf32>, vector<64x64xf32>, vector<32x64xf32> -> vector<32x64xf32>
    %60 = arith.addf %56, %59 : vector<32x64xf32>
    %c1 = arith.constant 1 : index
    %c0_53 = arith.constant 0 : index
    %61 = vector.load %arg6[%c1, %c0_53] : memref<4x64xf32, #tpu.memory_space<vmem>>, vector<1x64xf32>
    %62 = vector.broadcast %61 : vector<1x64xf32> to vector<32x64xf32>
    %63 = arith.mulf %60, %62 : vector<32x64xf32>
    %c1_54 = arith.constant 1 : index
    %c0_55 = arith.constant 0 : index
    %64 = vector.load %arg7[%c1_54, %c0_55] : memref<4x64xf32, #tpu.memory_space<vmem>>, vector<1x64xf32>
    %65 = vector.broadcast %64 : vector<1x64xf32> to vector<32x64xf32>
    %66 = arith.addf %63, %65 : vector<32x64xf32>
    %67 = math.tanh %66 : vector<32x64xf32>
    %68 = vector.extract_strided_slice %67 {offsets = [0, 0], sizes = [7, 64], strides = [1, 1]} : vector<32x64xf32> to vector<7x64xf32>
    %c8_56 = arith.constant 8 : index
    %c0_57 = arith.constant 0 : index
    %69 = vector.load %arg11[%c8_56, %c0_57] : memref<48x64xf32, #tpu.memory_space<vmem>>, vector<7x64xf32>
    tpu.vector_store %arg11[%c8_56, %c0_57], %68 {strides = array<i32>} : memref<48x64xf32, #tpu.memory_space<vmem>>, vector<7x64xf32>,
    %70 = vector.extract_strided_slice %67 {offsets = [16, 0], sizes = [7, 64], strides = [1, 1]} : vector<32x64xf32> to vector<7x64xf32>
    %c24 = arith.constant 24 : index
    %c0_58 = arith.constant 0 : index
    %71 = vector.load %arg11[%c24, %c0_58] : memref<48x64xf32, #tpu.memory_space<vmem>>, vector<7x64xf32>
    tpu.vector_store %arg11[%c24, %c0_58], %70 {strides = array<i32>} : memref<48x64xf32, #tpu.memory_space<vmem>>, vector<7x64xf32>,
    %cst_59 = arith.constant 0.000000e+00 : f32
    %72 = vector.broadcast %cst_59 : f32 to vector<16x64xf32>
    %c6_60 = arith.constant 6 : index
    %c0_61 = arith.constant 0 : index
    %73 = tpu.strided_load %arg11[%c6_60, %c0_61] {strides = array<i32: 2, 1>} : memref<48x64xf32, #tpu.memory_space<vmem>>, vector<16x64xf32>
    %c0_62 = arith.constant 0 : index
    %c0_63 = arith.constant 0 : index
    %74 = vector.load %arg4[%c0_62, %c0_63] : memref<320x64xf32, #tpu.memory_space<vmem>>, vector<64x64xf32>
    %cst_64 = arith.constant dense<0.000000e+00> : vector<16x64xf32>
    %75 = tpu.matmul %73, %74, %cst_64 {dimension_numbers = #tpu.dot_dimension_numbers<[1], [0], [0], [1], [0, 0, 1, 1], [], []>} : vector<16x64xf32>, vector<64x64xf32>, vector<16x64xf32> -> vector<16x64xf32>
    %76 = arith.addf %72, %75 : vector<16x64xf32>
    %c7_65 = arith.constant 7 : index
    %c0_66 = arith.constant 0 : index
    %77 = tpu.strided_load %arg11[%c7_65, %c0_66] {strides = array<i32: 2, 1>} : memref<48x64xf32, #tpu.memory_space<vmem>>, vector<16x64xf32>
    %c64_67 = arith.constant 64 : index
    %c0_68 = arith.constant 0 : index
    %78 = vector.load %arg4[%c64_67, %c0_68] : memref<320x64xf32, #tpu.memory_space<vmem>>, vector<64x64xf32>
    %cst_69 = arith.constant dense<0.000000e+00> : vector<16x64xf32>
    %79 = tpu.matmul %77, %78, %cst_69 {dimension_numbers = #tpu.dot_dimension_numbers<[1], [0], [0], [1], [0, 0, 1, 1], [], []>} : vector<16x64xf32>, vector<64x64xf32>, vector<16x64xf32> -> vector<16x64xf32>
    %80 = arith.addf %76, %79 : vector<16x64xf32>
    %c8_70 = arith.constant 8 : index
    %c0_71 = arith.constant 0 : index
    %81 = tpu.strided_load %arg11[%c8_70, %c0_71] {strides = array<i32: 2, 1>} : memref<48x64xf32, #tpu.memory_space<vmem>>, vector<16x64xf32>
    %c128_72 = arith.constant 128 : index
    %c0_73 = arith.constant 0 : index
    %82 = vector.load %arg4[%c128_72, %c0_73] : memref<320x64xf32, #tpu.memory_space<vmem>>, vector<64x64xf32>
    %cst_74 = arith.constant dense<0.000000e+00> : vector<16x64xf32>
    %83 = tpu.matmul %81, %82, %cst_74 {dimension_numbers = #tpu.dot_dimension_numbers<[1], [0], [0], [1], [0, 0, 1, 1], [], []>} : vector<16x64xf32>, vector<64x64xf32>, vector<16x64xf32> -> vector<16x64xf32>
    %84 = arith.addf %80, %83 : vector<16x64xf32>
    %c9_75 = arith.constant 9 : index
    %c0_76 = arith.constant 0 : index
    %85 = tpu.strided_load %arg11[%c9_75, %c0_76] {strides = array<i32: 2, 1>} : memref<48x64xf32, #tpu.memory_space<vmem>>, vector<16x64xf32>
    %c192_77 = arith.constant 192 : index
    %c0_78 = arith.constant 0 : index
    %86 = vector.load %arg4[%c192_77, %c0_78] : memref<320x64xf32, #tpu.memory_space<vmem>>, vector<64x64xf32>
    %cst_79 = arith.constant dense<0.000000e+00> : vector<16x64xf32>
    %87 = tpu.matmul %85, %86, %cst_79 {dimension_numbers = #tpu.dot_dimension_numbers<[1], [0], [0], [1], [0, 0, 1, 1], [], []>} : vector<16x64xf32>, vector<64x64xf32>, vector<16x64xf32> -> vector<16x64xf32>
    %88 = arith.addf %84, %87 : vector<16x64xf32>
    %c10_80 = arith.constant 10 : index
    %c0_81 = arith.constant 0 : index
    %89 = tpu.strided_load %arg11[%c10_80, %c0_81] {strides = array<i32: 2, 1>} : memref<48x64xf32, #tpu.memory_space<vmem>>, vector<16x64xf32>
    %c256_82 = arith.constant 256 : index
    %c0_83 = arith.constant 0 : index
    %90 = vector.load %arg4[%c256_82, %c0_83] : memref<320x64xf32, #tpu.memory_space<vmem>>, vector<64x64xf32>
    %cst_84 = arith.constant dense<0.000000e+00> : vector<16x64xf32>
    %91 = tpu.matmul %89, %90, %cst_84 {dimension_numbers = #tpu.dot_dimension_numbers<[1], [0], [0], [1], [0, 0, 1, 1], [], []>} : vector<16x64xf32>, vector<64x64xf32>, vector<16x64xf32> -> vector<16x64xf32>
    %92 = arith.addf %88, %91 : vector<16x64xf32>
    %c2 = arith.constant 2 : index
    %c0_85 = arith.constant 0 : index
    %93 = vector.load %arg6[%c2, %c0_85] : memref<4x64xf32, #tpu.memory_space<vmem>>, vector<1x64xf32>
    %94 = vector.broadcast %93 : vector<1x64xf32> to vector<16x64xf32>
    %95 = arith.mulf %92, %94 : vector<16x64xf32>
    %c2_86 = arith.constant 2 : index
    %c0_87 = arith.constant 0 : index
    %96 = vector.load %arg7[%c2_86, %c0_87] : memref<4x64xf32, #tpu.memory_space<vmem>>, vector<1x64xf32>
    %97 = vector.broadcast %96 : vector<1x64xf32> to vector<16x64xf32>
    %98 = arith.addf %95, %97 : vector<16x64xf32>
    %99 = math.tanh %98 : vector<16x64xf32>
    %100 = vector.extract_strided_slice %99 {offsets = [0, 0], sizes = [4, 64], strides = [1, 1]} : vector<16x64xf32> to vector<4x64xf32>
    %c8_88 = arith.constant 8 : index
    %c0_89 = arith.constant 0 : index
    %101 = vector.load %arg12[%c8_88, %c0_89] : memref<40x64xf32, #tpu.memory_space<vmem>>, vector<4x64xf32>
    tpu.vector_store %arg12[%c8_88, %c0_89], %100 {strides = array<i32>} : memref<40x64xf32, #tpu.memory_space<vmem>>, vector<4x64xf32>,
    %102 = vector.extract_strided_slice %99 {offsets = [8, 0], sizes = [4, 64], strides = [1, 1]} : vector<16x64xf32> to vector<4x64xf32>
    %c24_90 = arith.constant 24 : index
    %c0_91 = arith.constant 0 : index
    %103 = vector.load %arg12[%c24_90, %c0_91] : memref<40x64xf32, #tpu.memory_space<vmem>>, vector<4x64xf32>
    tpu.vector_store %arg12[%c24_90, %c0_91], %102 {strides = array<i32>} : memref<40x64xf32, #tpu.memory_space<vmem>>, vector<4x64xf32>,
    %cst_92 = arith.constant 0.000000e+00 : f32
    %104 = vector.broadcast %cst_92 : f32 to vector<16x64xf32>
    %c7_93 = arith.constant 7 : index
    %c0_94 = arith.constant 0 : index
    %105 = tpu.strided_load %arg12[%c7_93, %c0_94] {strides = array<i32: 2, 1>} : memref<40x64xf32, #tpu.memory_space<vmem>>, vector<16x64xf32>
    %c0_95 = arith.constant 0 : index
    %c0_96 = arith.constant 0 : index
    %106 = vector.load %arg5[%c0_95, %c0_96] : memref<192x64xf32, #tpu.memory_space<vmem>>, vector<64x64xf32>
    %cst_97 = arith.constant dense<0.000000e+00> : vector<16x64xf32>
    %107 = tpu.matmul %105, %106, %cst_97 {dimension_numbers = #tpu.dot_dimension_numbers<[1], [0], [0], [1], [0, 0, 1, 1], [], []>} : vector<16x64xf32>, vector<64x64xf32>, vector<16x64xf32> -> vector<16x64xf32>
    %108 = arith.addf %104, %107 : vector<16x64xf32>
    %c8_98 = arith.constant 8 : index
    %c0_99 = arith.constant 0 : index
    %109 = tpu.strided_load %arg12[%c8_98, %c0_99] {strides = array<i32: 2, 1>} : memref<40x64xf32, #tpu.memory_space<vmem>>, vector<16x64xf32>
    %c64_100 = arith.constant 64 : index
    %c0_101 = arith.constant 0 : index
    %110 = vector.load %arg5[%c64_100, %c0_101] : memref<192x64xf32, #tpu.memory_space<vmem>>, vector<64x64xf32>
    %cst_102 = arith.constant dense<0.000000e+00> : vector<16x64xf32>
    %111 = tpu.matmul %109, %110, %cst_102 {dimension_numbers = #tpu.dot_dimension_numbers<[1], [0], [0], [1], [0, 0, 1, 1], [], []>} : vector<16x64xf32>, vector<64x64xf32>, vector<16x64xf32> -> vector<16x64xf32>
    %112 = arith.addf %108, %111 : vector<16x64xf32>
    %c9_103 = arith.constant 9 : index
    %c0_104 = arith.constant 0 : index
    %113 = tpu.strided_load %arg12[%c9_103, %c0_104] {strides = array<i32: 2, 1>} : memref<40x64xf32, #tpu.memory_space<vmem>>, vector<16x64xf32>
    %c128_105 = arith.constant 128 : index
    %c0_106 = arith.constant 0 : index
    %114 = vector.load %arg5[%c128_105, %c0_106] : memref<192x64xf32, #tpu.memory_space<vmem>>, vector<64x64xf32>
    %cst_107 = arith.constant dense<0.000000e+00> : vector<16x64xf32>
    %115 = tpu.matmul %113, %114, %cst_107 {dimension_numbers = #tpu.dot_dimension_numbers<[1], [0], [0], [1], [0, 0, 1, 1], [], []>} : vector<16x64xf32>, vector<64x64xf32>, vector<16x64xf32> -> vector<16x64xf32>
    %116 = arith.addf %112, %115 : vector<16x64xf32>
    %c3 = arith.constant 3 : index
    %c0_108 = arith.constant 0 : index
    %117 = vector.load %arg6[%c3, %c0_108] : memref<4x64xf32, #tpu.memory_space<vmem>>, vector<1x64xf32>
    %118 = vector.broadcast %117 : vector<1x64xf32> to vector<16x64xf32>
    %119 = arith.mulf %116, %118 : vector<16x64xf32>
    %c3_109 = arith.constant 3 : index
    %c0_110 = arith.constant 0 : index
    %120 = vector.load %arg7[%c3_109, %c0_110] : memref<4x64xf32, #tpu.memory_space<vmem>>, vector<1x64xf32>
    %121 = vector.broadcast %120 : vector<1x64xf32> to vector<16x64xf32>
    %122 = arith.addf %119, %121 : vector<16x64xf32>
    %123 = math.tanh %122 : vector<16x64xf32>
    %cst_111 = arith.constant 0.000000e+00 : f32
    %124 = vector.broadcast %cst_111 : f32 to vector<16x64xf32>
    %125 = arith.maximumf %123, %124 : vector<16x64xf32>
    %c0_112 = arith.constant 0 : index
    %c0_113 = arith.constant 0 : index
    %126 = vector.load %arg8[%c0_112, %c0_113] : memref<16x64xf32, #tpu.memory_space<vmem>>, vector<16x64xf32>
    tpu.vector_store %arg8[%c0_112, %c0_113], %125 {strides = array<i32>} : memref<16x64xf32, #tpu.memory_space<vmem>>, vector<16x64xf32>,
    return
  }
  func.func @transform_0(%arg0: i32) -> (i32, i32) {
    %c0_i32 = arith.constant 0 : i32
    %c0_i32_0 = arith.constant 0 : i32
    return %arg0, %c0_i32 : i32, i32
  }
  func.func @transform_1(%arg0: i32) -> (i32, i32) {
    %c0_i32 = arith.constant 0 : i32
    %c0_i32_0 = arith.constant 0 : i32
    %c0_i32_1 = arith.constant 0 : i32
    return %c0_i32, %c0_i32_0 : i32, i32
  }
  func.func @transform_2(%arg0: i32) -> (i32, i32) {
    %c0_i32 = arith.constant 0 : i32
    %c0_i32_0 = arith.constant 0 : i32
    %c0_i32_1 = arith.constant 0 : i32
    return %c0_i32, %c0_i32_0 : i32, i32
  }
  func.func @transform_3(%arg0: i32) -> (i32, i32) {
    %c0_i32 = arith.constant 0 : i32
    %c0_i32_0 = arith.constant 0 : i32
    %c0_i32_1 = arith.constant 0 : i32
    return %c0_i32, %c0_i32_0 : i32, i32
  }
  func.func @transform_4(%arg0: i32) -> (i32, i32) {
    %c0_i32 = arith.constant 0 : i32
    %c0_i32_0 = arith.constant 0 : i32
    %c0_i32_1 = arith.constant 0 : i32
    return %c0_i32, %c0_i32_0 : i32, i32
  }
  func.func @transform_5(%arg0: i32) -> (i32, i32) {
    %c0_i32 = arith.constant 0 : i32
    %c0_i32_0 = arith.constant 0 : i32
    %c0_i32_1 = arith.constant 0 : i32
    return %c0_i32, %c0_i32_0 : i32, i32
  }
  func.func @transform_6(%arg0: i32) -> (i32, i32) {
    %c0_i32 = arith.constant 0 : i32
    %c0_i32_0 = arith.constant 0 : i32
    %c0_i32_1 = arith.constant 0 : i32
    return %c0_i32, %c0_i32_0 : i32, i32
  }
  func.func @transform_7(%arg0: i32) -> (i32, i32) {
    %c0_i32 = arith.constant 0 : i32
    %c0_i32_0 = arith.constant 0 : i32
    return %arg0, %c0_i32 : i32, i32
  }
}

</mosaic_0001>

<llo_original>
// kernel: conv_layer_forward.1
$region0: #{conv_layer_forward.1}
  #allocation0 [shape = 'u32[]', space=smem, size = 0x4, offset = 0x4, fixed_abs, tag = 'smem constant byte address 0x4 - core index']
  #allocation1 [shape = 'u32[144,128]{1,0:T(1,128)}', space=vmem, size = 0x12000, scoped, tag = 'internal scratch']
  #allocation2 [shape = 'f32[64,64]{1,0:T(8,128)}', space=vmem, size = 0x8000, scoped, tag = 'scratch operand']
  #allocation3 [shape = 'f32[80,64]{1,0:T(8,128)}', space=vmem, size = 0xa000, scoped, tag = 'scratch operand']
  #allocation4 [shape = 'f32[48,64]{1,0:T(8,128)}', space=vmem, size = 0x6000, scoped, tag = 'scratch operand']
  #allocation5 [shape = 'f32[40,64]{1,0:T(8,128)}', space=vmem, size = 0x5000, scoped, tag = 'scratch operand']
  %s0 = inlined_call_operand.vmem [shape: f32[128,40], index: 0, kind: input, shape index: {}]
  %s1 = inlined_call_operand.vmem [shape: f32[40,64], index: 1, kind: input, shape index: {}]
  %s2 = inlined_call_operand.vmem [shape: f32[320,64], index: 2, kind: input, shape index: {}]
  %s3 = inlined_call_operand.vmem [shape: f32[320,64], index: 3, kind: input, shape index: {}]
  %s4 = inlined_call_operand.vmem [shape: f32[192,64], index: 4, kind: input, shape index: {}]
  %s5 = inlined_call_operand.vmem [shape: f32[4,64], index: 5, kind: input, shape index: {}]
  %s6 = inlined_call_operand.vmem [shape: f32[4,64], index: 6, kind: input, shape index: {}]
  %s7 = inlined_call_operand.vmem [shape: f32[32,64], index: 7, kind: output, shape index: {}]
  %s8 = sld [smem:[#allocation0]]
  $region61: #{conv_layer_forward.1} parent=0
    _
  %s10 = ssub.s32 1, %s8
  %s11 = scalar_select 0, %s10, %s8
  loop: start=0, step=1, limit=4
  $region2: #{conv_layer_forward.1} parent=0 // loop_pre_header
    _
  $region3: #{conv_layer_forward.1} parent=0 // loop_header
    %s13 = sphi 0, %s17
    %p14 = scmp.ge.s32.totalorder %s13, 4
    %s23 = sphi 0, %s25
    %s26 = sphi 0, %s23
    %s27 = sphi 0, %s26
    %s43 = sphi 0, %s27
    %s47 = sphi 0, %s47
    %s49 = sphi 0, %s47
    %s50 = sphi 0, %s49
    %s64 = sphi 0, %s50
    %s68 = sphi 0, %s68
    %s70 = sphi 0, %s68
    %s71 = sphi 0, %s70
    %s85 = sphi 0, %s71
    %s89 = sphi 0, %s89
    %s91 = sphi 0, %s89
    %s92 = sphi 0, %s91
    %s106 = sphi 0, %s92
    %s110 = sphi 0, %s110
    %s112 = sphi 0, %s110
    %s113 = sphi 0, %s112
    %s127 = sphi 0, %s113
    %s131 = sphi 0, %s131
    %s133 = sphi 0, %s131
    %s134 = sphi 0, %s133
    %s148 = sphi 0, %s134
    %s152 = sphi 0, %s152
    %s154 = sphi 0, %s152
    %s155 = sphi 0, %s154
    %s169 = sphi 0, %s155
    %s175 = sphi 0, %s177
    %s178 = sphi 0, %s175
    %s179 = sphi 0, %s178
    %s195 = sphi 0, %s179
  $region4: #{conv_layer_forward.1} parent=0 // loop_header_branch
    %16 = sbr.rel (%p14) target = $region8
  $region5: #{conv_layer_forward.1} parent=0 // loop_body
    %s18 = ssub.s32 %s13, 1
    %s19 = ssub.s32 %s13, 2
    %s20 = sadd.s32 %s13, 1
    %s21 = ssub.s32 %s13, %s20
    %p22 = scmp.eq.s32.totalorder %s21, 0
    %s24 = sadd.s32 %s23, 1
    %s25 = scalar_select %p22, %s23, %s24
    %p28 = pneg %p22
    %p29 = scmp.eq.s32.totalorder %s13, 1
    %p30 = por %p28, %p29
    %p31 = scmp.ne.s32.totalorder %s23, %s26
    %p32 = scmp.eq.s32.totalorder %s13, 0
    %p33 = por %p31, %p32
    %p34 = scmp.ne.s32.totalorder %s23, %s26
    %p35 = scmp.eq.s32.totalorder %s18, 1
    %p36 = por %p34, %p35
    %p37 = scmp.ne.s32.totalorder %s26, %s27
    %p38 = scmp.eq.s32.totalorder %s18, 0
    %p39 = por %p37, %p38
    %p40 = scmp.ne.s32.totalorder %s26, %s27
    %p41 = scmp.eq.s32.totalorder %s19, 1
    %p42 = por %p40, %p41
    %p44 = scmp.ne.s32.totalorder %s27, %s43
    %p45 = scmp.eq.s32.totalorder %s19, 0
    %p46 = por %p44, %p45
    %s48 = sadd.s32 %s47, 1
    %p51 = scmp.eq.s32.totalorder %s13, 1
    %p52 = scmp.ne.s32.totalorder %s47, %s49
    %p53 = scmp.eq.s32.totalorder %s13, 0
    %p54 = por %p52, %p53
    %p55 = scmp.ne.s32.totalorder %s47, %s49
    %p56 = scmp.eq.s32.totalorder %s18, 1
    %p57 = por %p55, %p56
    %p58 = scmp.ne.s32.totalorder %s49, %s50
    %p59 = scmp.eq.s32.totalorder %s18, 0
    %p60 = por %p58, %p59
    %p61 = scmp.ne.s32.totalorder %s49, %s50
    %p62 = scmp.eq.s32.totalorder %s19, 1
    %p63 = por %p61, %p62
    %p65 = scmp.ne.s32.totalorder %s50, %s64
    %p66 = scmp.eq.s32.totalorder %s19, 0
    %p67 = por %p65, %p66
    %s69 = sadd.s32 %s68, 1
    %p72 = scmp.eq.s32.totalorder %s13, 1
    %p73 = scmp.ne.s32.totalorder %s68, %s70
    %p74 = scmp.eq.s32.totalorder %s13, 0
    %p75 = por %p73, %p74
    %p76 = scmp.ne.s32.totalorder %s68, %s70
    %p77 = scmp.eq.s32.totalorder %s18, 1
    %p78 = por %p76, %p77
    %p79 = scmp.ne.s32.totalorder %s70, %s71
    %p80 = scmp.eq.s32.totalorder %s18, 0
    %p81 = por %p79, %p80
    %p82 = scmp.ne.s32.totalorder %s70, %s71
    %p83 = scmp.eq.s32.totalorder %s19, 1
    %p84 = por %p82, %p83
    %p86 = scmp.ne.s32.totalorder %s71, %s85
    %p87 = scmp.eq.s32.totalorder %s19, 0
    %p88 = por %p86, %p87
    %s90 = sadd.s32 %s89, 1
    %p93 = scmp.eq.s32.totalorder %s13, 1
    %p94 = scmp.ne.s32.totalorder %s89, %s91
    %p95 = scmp.eq.s32.totalorder %s13, 0
    %p96 = por %p94, %p95
    %p97 = scmp.ne.s32.totalorder %s89, %s91
    %p98 = scmp.eq.s32.totalorder %s18, 1
    %p99 = por %p97, %p98
    %p100 = scmp.ne.s32.totalorder %s91, %s92
    %p101 = scmp.eq.s32.totalorder %s18, 0
    %p102 = por %p100, %p101
    %p103 = scmp.ne.s32.totalorder %s91, %s92
    %p104 = scmp.eq.s32.totalorder %s19, 1
    %p105 = por %p103, %p104
    %p107 = scmp.ne.s32.totalorder %s92, %s106
    %p108 = scmp.eq.s32.totalorder %s19, 0
    %p109 = por %p107, %p108
    %s111 = sadd.s32 %s110, 1
    %p114 = scmp.eq.s32.totalorder %s13, 1
    %p115 = scmp.ne.s32.totalorder %s110, %s112
    %p116 = scmp.eq.s32.totalorder %s13, 0
    %p117 = por %p115, %p116
    %p118 = scmp.ne.s32.totalorder %s110, %s112
    %p119 = scmp.eq.s32.totalorder %s18, 1
    %p120 = por %p118, %p119
    %p121 = scmp.ne.s32.totalorder %s112, %s113
    %p122 = scmp.eq.s32.totalorder %s18, 0
    %p123 = por %p121, %p122
    %p124 = scmp.ne.s32.totalorder %s112, %s113
    %p125 = scmp.eq.s32.totalorder %s19, 1
    %p126 = por %p124, %p125
    %p128 = scmp.ne.s32.totalorder %s113, %s127
    %p129 = scmp.eq.s32.totalorder %s19, 0
    %p130 = por %p128, %p129
    %s132 = sadd.s32 %s131, 1
    %p135 = scmp.eq.s32.totalorder %s13, 1
    %p136 = scmp.ne.s32.totalorder %s131, %s133
    %p137 = scmp.eq.s32.totalorder %s13, 0
    %p138 = por %p136, %p137
    %p139 = scmp.ne.s32.totalorder %s131, %s133
    %p140 = scmp.eq.s32.totalorder %s18, 1
    %p141 = por %p139, %p140
    %p142 = scmp.ne.s32.totalorder %s133, %s134
    %p143 = scmp.eq.s32.totalorder %s18, 0
    %p144 = por %p142, %p143
    %p145 = scmp.ne.s32.totalorder %s133, %s134
    %p146 = scmp.eq.s32.totalorder %s19, 1
    %p147 = por %p145, %p146
    %p149 = scmp.ne.s32.totalorder %s134, %s148
    %p150 = scmp.eq.s32.totalorder %s19, 0
    %p151 = por %p149, %p150
    %s153 = sadd.s32 %s152, 1
    %p156 = scmp.eq.s32.totalorder %s13, 1
    %p157 = scmp.ne.s32.totalorder %s152, %s154
    %p158 = scmp.eq.s32.totalorder %s13, 0
    %p159 = por %p157, %p158
    %p160 = scmp.ne.s32.totalorder %s152, %s154
    %p161 = scmp.eq.s32.totalorder %s18, 1
    %p162 = por %p160, %p161
    %p163 = scmp.ne.s32.totalorder %s154, %s155
    %p164 = scmp.eq.s32.totalorder %s18, 0
    %p165 = por %p163, %p164
    %p166 = scmp.ne.s32.totalorder %s154, %s155
    %p167 = scmp.eq.s32.totalorder %s19, 1
    %p168 = por %p166, %p167
    %p170 = scmp.ne.s32.totalorder %s155, %s169
    %p171 = scmp.eq.s32.totalorder %s19, 0
    %p172 = por %p170, %p171
    %s173 = ssub.s32 %s13, %s20
    %p174 = scmp.eq.s32.totalorder %s173, 0
    %s176 = sadd.s32 %s175, 1
    %s177 = scalar_select %p174, %s175, %s176
    %p180 = pneg %p174
    %p181 = scmp.eq.s32.totalorder %s13, 1
    %p182 = por %p180, %p181
    %p183 = scmp.ne.s32.totalorder %s175, %s178
    %p184 = scmp.eq.s32.totalorder %s13, 0
    %p185 = por %p183, %p184
    %p186 = scmp.ne.s32.totalorder %s175, %s178
    %p187 = scmp.eq.s32.totalorder %s18, 1
    %p188 = por %p186, %p187
    %p189 = scmp.ne.s32.totalorder %s178, %s179
    %p190 = scmp.eq.s32.totalorder %s18, 0
    %p191 = por %p189, %p190
    %p192 = scmp.ne.s32.totalorder %s178, %s179
    %p193 = scmp.eq.s32.totalorder %s19, 1
    %p194 = por %p192, %p193
    %p196 = scmp.ne.s32.totalorder %s179, %s195
    %p197 = scmp.eq.s32.totalorder %s19, 0
    %p198 = por %p196, %p197
    %p199 = scmp.le.s32.totalorder 1, %s13
    %p200 = scmp.lt.s32.totalorder %s13, 3
    %p201 = pnand %p199, %p200
    %p202 = pneg %p201
    // Predicated region
    $region9: #{conv_layer_forward.1} parent=5 // pred_check
      _
    $region10: #{conv_layer_forward.1} parent=5 // pred_check_branch
      %204 = sbr.rel (%p201) target = $region12
    $region11: #{conv_layer_forward.1} parent=5 // pred_region
      %s205 = ssub.s32 %s13, 1
      // Predicated region
      $region13: #{conv_layer_forward.1} parent=11 // pred_check
        %p206 = pneg %p60
      $region14: #{conv_layer_forward.1} parent=11 // pred_check_branch
        %208 = sbr.rel (%p206) target = $region16
      $region15: #{conv_layer_forward.1} parent=11 // pred_region
        _
      $region16: #{conv_layer_forward.1} parent=11 // pred_fallthru
        _
      // Predicated region
      $region17: #{conv_layer_forward.1} parent=11 // pred_check
        %p209 = pneg %p81
      $region18: #{conv_layer_forward.1} parent=11 // pred_check_branch
        %211 = sbr.rel (%p209) target = $region20
      $region19: #{conv_layer_forward.1} parent=11 // pred_region
        _
      $region20: #{conv_layer_forward.1} parent=11 // pred_fallthru
        _
      // Predicated region
      $region21: #{conv_layer_forward.1} parent=11 // pred_check
        %p212 = pneg %p102
      $region22: #{conv_layer_forward.1} parent=11 // pred_check_branch
        %214 = sbr.rel (%p212) target = $region24
      $region23: #{conv_layer_forward.1} parent=11 // pred_region
        _
      $region24: #{conv_layer_forward.1} parent=11 // pred_fallthru
        _
      // Predicated region
      $region25: #{conv_layer_forward.1} parent=11 // pred_check
        %p215 = pneg %p123
      $region26: #{conv_layer_forward.1} parent=11 // pred_check_branch
        %217 = sbr.rel (%p215) target = $region28
      $region27: #{conv_layer_forward.1} parent=11 // pred_region
        _
      $region28: #{conv_layer_forward.1} parent=11 // pred_fallthru
        _
      // Predicated region
      $region29: #{conv_layer_forward.1} parent=11 // pred_check
        %p218 = pneg %p144
      $region30: #{conv_layer_forward.1} parent=11 // pred_check_branch
        %220 = sbr.rel (%p218) target = $region32
      $region31: #{conv_layer_forward.1} parent=11 // pred_region
        _
      $region32: #{conv_layer_forward.1} parent=11 // pred_fallthru
        _
      // Predicated region
      $region33: #{conv_layer_forward.1} parent=11 // pred_check
        %p221 = pneg %p165
      $region34: #{conv_layer_forward.1} parent=11 // pred_check_branch
        %223 = sbr.rel (%p221) target = $region36
      $region35: #{conv_layer_forward.1} parent=11 // pred_region
        _
      $region36: #{conv_layer_forward.1} parent=11 // pred_fallthru
        _
    $region12: #{conv_layer_forward.1} parent=5 // pred_fallthru
      _
    %p224 = scmp.lt.s32.totalorder %s13, 2
    // Predicated region
    $region37: #{conv_layer_forward.1} parent=5 // pred_check
      %p225 = pneg %p224
    $region38: #{conv_layer_forward.1} parent=5 // pred_check_branch
      %227 = sbr.rel (%p225) target = $region40
    $region39: #{conv_layer_forward.1} parent=5 // pred_region
      // Predicated region
      $region41: #{conv_layer_forward.1} parent=39 // pred_check
        %p228 = pneg %p33
      $region42: #{conv_layer_forward.1} parent=39 // pred_check_branch
        %230 = sbr.rel (%p228) target = $region44
      $region43: #{conv_layer_forward.1} parent=39 // pred_region
        %s231 = smul.u32 8, %s13
        %p232 = scmp.lt.s32.totalorder %s231, 15
        %s233 = scalar_select %p232, %s231, 15
        %s234 = smul.addr %s233, 8
        %s235 = scalar_lea.vmem %s0, %s234
        %s236 = smul.u32 8, %s13
      $region44: #{conv_layer_forward.1} parent=39 // pred_fallthru
        _
    $region40: #{conv_layer_forward.1} parent=5 // pred_fallthru
      _
    %p237 = scmp.le.s32.totalorder 1, %s13
    %p238 = scmp.lt.s32.totalorder %s13, 3
    %p239 = pnand %p237, %p238
    %p240 = pneg %p239
    // Predicated region
    $region45: #{conv_layer_forward.1} parent=5 // pred_check
      _
    $region46: #{conv_layer_forward.1} parent=5 // pred_check_branch
      %242 = sbr.rel (%p239) target = $region48
    $region47: #{conv_layer_forward.1} parent=5 // pred_region
      %s243 = ssub.s32 %s13, 1
      %s244 = smul.u32 8, %s18
      %p245 = scmp.lt.s32.totalorder %s244, 15
      %s246 = scalar_select %p245, %s244, 15
      %s247 = smul.addr %s246, 8
      %s248 = scalar_lea.vmem %s0, %s247
      %p249 = pneg %p39
      %p250 = pneg %p36
      %p251 = pneg %p60
      %p252 = pneg %p57
      %p253 = pneg %p81
      %p254 = pneg %p78
      %p255 = pneg %p102
      %p256 = pneg %p99
      %p257 = pneg %p123
      %p258 = pneg %p120
      %p259 = pneg %p144
      %p260 = pneg %p141
      %p261 = pneg %p165
      %p262 = pneg %p162
      %p263 = pneg %p191
      %p264 = pneg %p188
      %s265 = smul.u32 2, %s18
      %p266 = scmp.lt.s32.totalorder %s265, 3
      %s267 = scalar_select %p266, %s265, 3
      %s268 = smul.addr %s267, 8
      %s269 = scalar_lea.vmem %s7, %s268
      %s270 = smul.u32 8, %s18
      %p271 = scmp.lt.s32.totalorder %s270, 15
      %s272 = scalar_select %p271, %s270, 15
      %s273 = smul.addr %s272, 8
      %s274 = scalar_lea.vmem %s0, %s273
      %s275 = smul.u32 8, %s18
      %s276 = smul.u32 2, %s18
      %p277 = scmp.lt.s32.totalorder %s276, 3
      %s278 = scalar_select %p277, %s276, 3
      %s279 = smul.addr %s278, 8
      %s280 = scalar_lea.vmem %s7, %s279
      %s281 = smul.u32 2, %s18
      %vm282 = vcmask 523264
      %283 = vst.msk [vmem:[#allocation3] sm:$0xff] %vm282, 0.0
      %284 = vst.msk [vmem:[#allocation3 + $0x15] sm:$0xff] %vm282, 0.0
      %285 = vst.msk [vmem:[#allocation3 + $0x1d] sm:$0xff] %vm282, 0.0
      %vm286 = vcmask 518144
      %287 = vst.msk [vmem:[#allocation3 + $0x25] sm:$0x7] %vm286, 0.0
      %288 = vst.msk [vmem:[#allocation3 + $0x35] sm:$0xff] %vm282, 0.0
      %289 = vst.msk [vmem:[#allocation3 + $0x3d] sm:$0xff] %vm282, 0.0
      %290 = vst.msk [vmem:[#allocation3 + $0x45] sm:$0x7] %vm286, 0.0
      %291 = vst.msk [vmem:[#allocation4] sm:$0xff] %vm282, 0.0
      %292 = vst.msk [vmem:[#allocation4 + $0xf] sm:$0xff] %vm282, 0.0
      %vm293 = vcmask 516096
      %294 = vst.msk [vmem:[#allocation4 + $0x17] sm:$0x1] %vm293, 0.0
      %295 = vst.msk [vmem:[#allocation4 + $0x1f] sm:$0xff] %vm282, 0.0
      %296 = vst.msk [vmem:[#allocation4 + $0x27] sm:$0x1] %vm293, 0.0
      %297 = vst.msk [vmem:[#allocation5] sm:$0xff] %vm282, 0.0
      %298 = vst.msk [vmem:[#allocation5 + $0xc] sm:$0xff] %vm282, 0.0
      %vm299 = vcmask 519168
      %300 = vst.msk [vmem:[#allocation5 + $0x14] sm:$0xf] %vm299, 0.0
      %301 = vst.msk [vmem:[#allocation5 + $0x1c] sm:$0xff] %vm282, 0.0
      %302 = vst.msk [vmem:[#allocation5 + $0x24] sm:$0xf] %vm299, 0.0
      %v303 = vld [vmem:[%s274] sm:$0xff]
      %v304 = vld [vmem:[%s274 + $0x8] sm:$0xff]
      %v305 = vld [vmem:[%s274 + $0x10] sm:$0xff]
      %v306 = vld [vmem:[%s274 + $0x18] sm:$0xff]
      %v307 = vld [vmem:[%s274 + $0x20] sm:$0xff]
      %v308 = vld [vmem:[%s274 + $0x28] sm:$0xff]
      %v309 = vld [vmem:[%s274 + $0x30] sm:$0xff]
      %v310 = vld [vmem:[%s274 + $0x38] sm:$0xff]
      %v311 = vld [vmem:[%s1] sm:$0xff]
      %v312 = vld [vmem:[%s1 + $0x8] sm:$0xff]
      %v313 = vld [vmem:[%s1 + $0x10] sm:$0xff]
      %v314 = vld [vmem:[%s1 + $0x18] sm:$0xff]
      %v315 = vld [vmem:[%s1 + $0x20] sm:$0xff]
      %vm316 = vcmask 326656
      %v318 = vsel %vm316, %v303, 0
      %v321 = vsel %vm316, %v304, 0
      %v324 = vsel %vm316, %v305, 0
      %v327 = vsel %vm316, %v306, 0
      %v330 = vsel %vm316, %v307, 0
      %v333 = vsel %vm316, %v308, 0
      %v336 = vsel %vm316, %v309, 0
      %v339 = vsel %vm316, %v310, 0
      %341 = vmatprep.subr.mxu0 0.0
      %342 = vmatpush1.msra.mxu0 %v311
      %343 = vmatprep.subr.mxu0 0.0
      %344 = vmatpush1.msra.mxu0 %v312
      %345 = vmatprep.subr.mxu0 0.0
      %346 = vmatpush1.msra.mxu0 %v313
      %347 = vmatprep.subr.mxu0 0.0
      %348 = vmatpush1.msra.mxu0 %v314
      %349 = vmatprep.subr.mxu0 0.0
      %350 = vmatpush1.msra.mxu0 %v315
      %351 = vmatprep.subr.mxu0 0.0
      %352 = vmatpush1.msra.mxu0 0.0
      %353 = vmatprep.subr.mxu0 0.0
      %354 = vmatpush1.msra.mxu0 0.0
      %355 = vmatprep.subr.mxu0 0.0
      %356 = vmatpush1.msra.mxu0 0.0
      %357 = vmatprep.subr.mxu0 0.0
      %358 = vmatpush1.msra.mxu0 0.0
      %359 = vmatprep.subr.mxu0 0.0
      %360 = vmatpush1.msra.mxu0 0.0
      %361 = vmatprep.subr.mxu0 0.0
      %362 = vmatpush1.msra.mxu0 0.0
      %363 = vmatprep.subr.mxu0 0.0
      %364 = vmatpush1.msra.mxu0 0.0
      %365 = vmatprep.subr.mxu0 0.0
      %366 = vmatpush1.msra.mxu0 0.0
      %367 = vmatprep.subr.mxu0 0.0
      %368 = vmatpush1.msra.mxu0 0.0
      %369 = vmatprep.subr.mxu0 0.0
      %370 = vmatpush1.msra.mxu0 0.0
      %371 = vmatprep.subr.mxu0 0.0
      %372 = vmatpush1.msra.mxu0 0.0
      %373 = vmatprep.subr.mxu0 0.0
      %374 = vmatpush1.msra.mxu0 0.0
      %375 = vmatprep.subr.mxu0 0.0
      %376 = vmatpush1.msra.mxu0 0.0
      %377 = vmatprep.subr.mxu0 0.0
      %378 = vmatpush1.msra.mxu0 0.0
      %379 = vmatprep.subr.mxu0 0.0
      %380 = vmatpush1.msra.mxu0 0.0
      %381 = vmatprep.subr.mxu0 0.0
      %382 = vmatpush1.msra.mxu0 0.0
      %383 = vmatprep.subr.mxu0 0.0
      %384 = vmatpush1.msra.mxu0 0.0
      %385 = vmatprep.subr.mxu0 0.0
      %386 = vmatpush1.msra.mxu0 0.0
      %387 = vmatprep.subr.mxu0 0.0
      %388 = vmatpush1.msra.mxu0 0.0
      %389 = vmatprep.subr.mxu0 0.0
      %390 = vmatpush1.msra.mxu0 0.0
      %391 = vmatprep.subr.mxu0 0.0
      %392 = vmatpush1.msra.mxu0 0.0
      %393 = vmatprep.subr.mxu0 0.0
      %394 = vmatpush1.msra.mxu0 0.0
      %395 = vmatprep.subr.mxu0 0.0
      %396 = vmatpush1.msra.mxu0 0.0
      %397 = vmatprep.subr.mxu0 0.0
      %398 = vmatpush1.msra.mxu0 0.0
      %399 = vmatprep.subr.mxu0 0.0
      %400 = vmatpush1.msra.mxu0 0.0
      %401 = vmatprep.subr.mxu0 0.0
      %402 = vmatpush1.msra.mxu0 0.0
      %403 = vmatprep.subr.mxu0 0.0
      %404 = vmatpush1.msra.mxu0 0.0
      %405 = vmatprep.mubr.f32.mxu0 0.0
      %406 = vmatmul.mubr.f32.gmra.mrb[0].mxu0 %v318
      %v407 = vpop.f32.mrb[0].mxu0
      %v408 = vadd.f32 0.0, %v407
      %v409 = vpop.f32.mrb[0].mxu0
      %410 = vmatprep.mubr.f32.mxu0 0.0
      %411 = vmatmul.mubr.f32.gmra.mrb[0].mxu0 %v321
      %v412 = vpop.f32.mrb[0].mxu0
      %v413 = vadd.f32 0.0, %v412
      %v414 = vpop.f32.mrb[0].mxu0
      %415 = vmatprep.mubr.f32.mxu0 0.0
      %416 = vmatmul.mubr.f32.gmra.mrb[0].mxu0 %v324
      %v417 = vpop.f32.mrb[0].mxu0
      %v418 = vadd.f32 0.0, %v417
      %v419 = vpop.f32.mrb[0].mxu0
      %420 = vmatprep.mubr.f32.mxu0 0.0
      %421 = vmatmul.mubr.f32.gmra.mrb[0].mxu0 %v327
      %v422 = vpop.f32.mrb[0].mxu0
      %v423 = vadd.f32 0.0, %v422
      %v424 = vpop.f32.mrb[0].mxu0
      %425 = vmatprep.mubr.f32.mxu0 0.0
      %426 = vmatmul.mubr.f32.gmra.mrb[0].mxu0 %v330
      %v427 = vpop.f32.mrb[0].mxu0
      %v428 = vadd.f32 0.0, %v427
      %v429 = vpop.f32.mrb[0].mxu0
      %430 = vmatprep.mubr.f32.mxu0 0.0
      %431 = vmatmul.mubr.f32.gmra.mrb[0].mxu0 %v333
      %v432 = vpop.f32.mrb[0].mxu0
      %v433 = vadd.f32 0.0, %v432
      %v434 = vpop.f32.mrb[0].mxu0
      %435 = vmatprep.mubr.f32.mxu0 0.0
      %436 = vmatmul.mubr.f32.gmra.mrb[0].mxu0 %v336
      %v437 = vpop.f32.mrb[0].mxu0
      %v438 = vadd.f32 0.0, %v437
      %v439 = vpop.f32.mrb[0].mxu0
      %440 = vmatprep.mubr.f32.mxu0 0.0
      %441 = vmatmul.mubr.f32.gmra.mrb[0].mxu0 %v339
      %v442 = vpop.f32.mrb[0].mxu0
      %v443 = vadd.f32 0.0, %v442
      %v444 = vpop.f32.mrb[0].mxu0
      %445 = vdwg.mxu0
      %v446 = vld [vmem:[%s5] sm:$0x1]
      %v447 = vlaneseq
      %v448 = vshrl.u32 %v447, 7
      %v449 = vsub.s32 0, %v448
      %v450 = vrot.slane %v446, %v449
      %v451 = vmul.f32 %v408, %v450
      %v452 = vmul.f32 %v413, %v450
      %v453 = vmul.f32 %v418, %v450
      %v454 = vmul.f32 %v423, %v450
      %v455 = vmul.f32 %v428, %v450
      %v456 = vmul.f32 %v433, %v450
      %v457 = vmul.f32 %v438, %v450
      %v458 = vmul.f32 %v443, %v450
      %v459 = vld [vmem:[%s6] sm:$0x1]
      %v460 = vlaneseq
      %v461 = vshrl.u32 %v460, 7
      %v462 = vsub.s32 0, %v461
      %v463 = vrot.slane %v459, %v462
      %v464 = vadd.f32 %v451, %v463
      %v465 = vadd.f32 %v452, %v463
      %v466 = vadd.f32 %v453, %v463
      %v467 = vadd.f32 %v454, %v463
      %v468 = vadd.f32 %v455, %v463
      %v469 = vadd.f32 %v456, %v463
      %v470 = vadd.f32 %v457, %v463
      %v471 = vadd.f32 %v458, %v463
      %v472 = vrot.slane %v464, 7
      %v473 = vrot.slane %v465, 7
      %v474 = vrot.slane %v466, 7
      %v475 = vrot.slane %v467, 7
      %v476 = vrot.slane %v468, 7
      %v477 = vrot.slane %v469, 7
      %v478 = vrot.slane %v470, 7
      %v479 = vrot.slane %v471, 7
      %v480 = vlaneseq
      %v481 = vshrl.u32 %v480, 7
      %vm482 = vcmp.lt.s32.totalorder %v481, 1
      %v483 = vsel %vm482, %v478, %v479
      %v484 = vsel %vm482, %v477, %v478
      %v485 = vsel %vm482, %v476, %v477
      %v486 = vsel %vm482, %v475, %v476
      %v487 = vsel %vm482, %v474, %v475
      %v488 = vsel %vm482, %v473, %v474
      %v489 = vsel %vm482, %v472, %v473
      %v490 = vsel %vm482, %v479, %v472
      %v491 = vmax.f32 %v464, %v490
      %v492 = vmax.f32 %v465, %v489
      %v493 = vmax.f32 %v466, %v488
      %v494 = vmax.f32 %v467, %v487
      %v495 = vmax.f32 %v468, %v486
      %v496 = vmax.f32 %v469, %v485
      %v497 = vmax.f32 %v470, %v484
      %v498 = vmax.f32 %v471, %v483
      %v499 = vrot.slane %v491, 6
      %v500 = vrot.slane %v492, 6
      %v501 = vrot.slane %v493, 6
      %v502 = vrot.slane %v494, 6
      %v503 = vrot.slane %v495, 6
      %v504 = vrot.slane %v496, 6
      %v505 = vrot.slane %v497, 6
      %v506 = vrot.slane %v498, 6
      %vm507 = vcmp.lt.s32.totalorder %v481, 2
      %v508 = vsel %vm507, %v505, %v506
      %v509 = vsel %vm507, %v504, %v505
      %v510 = vsel %vm507, %v503, %v504
      %v511 = vsel %vm507, %v502, %v503
      %v512 = vsel %vm507, %v501, %v502
      %v513 = vsel %vm507, %v500, %v501
      %v514 = vsel %vm507, %v499, %v500
      %v515 = vsel %vm507, %v506, %v499
      %v516 = vmax.f32 %v491, %v515
      %v517 = vmax.f32 %v492, %v514
      %v518 = vmax.f32 %v493, %v513
      %v519 = vmax.f32 %v494, %v512
      %v520 = vmax.f32 %v495, %v511
      %v521 = vmax.f32 %v496, %v510
      %v522 = vmax.f32 %v497, %v509
      %v523 = vmax.f32 %v498, %v508
      %v524 = vrot.slane %v516, 4
      %v525 = vrot.slane %v517, 4
      %v526 = vrot.slane %v518, 4
      %v527 = vrot.slane %v519, 4
      %v528 = vrot.slane %v520, 4
      %v529 = vrot.slane %v521, 4
      %v530 = vrot.slane %v522, 4
      %v531 = vrot.slane %v523, 4
      %vm532 = vcmp.lt.s32.totalorder %v481, 4
      %v533 = vsel %vm532, %v530, %v531
      %v534 = vsel %vm532, %v529, %v530
      %v535 = vsel %vm532, %v528, %v529
      %v536 = vsel %vm532, %v527, %v528
      %v537 = vsel %vm532, %v526, %v527
      %v538 = vsel %vm532, %v525, %v526
      %v539 = vsel %vm532, %v524, %v525
      %v540 = vsel %vm532, %v531, %v524
      %v541 = vmax.f32 %v516, %v540
      %v542 = vmax.f32 %v517, %v539
      %v543 = vmax.f32 %v518, %v538
      %v544 = vmax.f32 %v519, %v537
      %v545 = vmax.f32 %v520, %v536
      %v546 = vmax.f32 %v521, %v535
      %v547 = vmax.f32 %v522, %v534
      %v548 = vmax.f32 %v523, %v533
      %549 = vst.msk [vmem:[#allocation2] sm:$0xff] %vm282, %v541
      %550 = vst.msk [vmem:[#allocation2 + $0x8] sm:$0xff] %vm282, %v542
      %551 = vst.msk [vmem:[#allocation2 + $0x10] sm:$0xff] %vm282, %v543
      %552 = vst.msk [vmem:[#allocation2 + $0x18] sm:$0xff] %vm282, %v544
      %553 = vst.msk [vmem:[#allocation2 + $0x20] sm:$0xff] %vm282, %v545
      %554 = vst.msk [vmem:[#allocation2 + $0x28] sm:$0xff] %vm282, %v546
      %555 = vst.msk [vmem:[#allocation2 + $0x30] sm:$0xff] %vm282, %v547
      %556 = vst.msk [vmem:[#allocation2 + $0x38] sm:$0xff] %vm282, %v548
      %s557 = scalar_lea.vmem [#allocation2], 7
      %v558 = vld [vmem:[%s557] ss:$2 sm:$0xff]
      %s559 = scalar_lea.vmem [#allocation2], 23
      %v560 = vld [vmem:[%s559] ss:$2 sm:$0x1f]
      %v561 = vtanh.pop %v558
      %v562 = vtanh.pop %v560
      %563 = vst.msk [vmem:[#allocation3 + $0x8] sm:$0xff] %vm282, %v561
      %vm564 = vcmask 520192
      %565 = vst.msk [vmem:[#allocation3 + $0x10] sm:$0x1f] %vm564, %v562
      %s566 = scalar_lea.vmem [#allocation2], 39
      %v567 = vld [vmem:[%s566] ss:$2 sm:$0xff]
      %s568 = scalar_lea.vmem [#allocation2], 55
      %v569 = vld [vmem:[%s568] ss:$2 sm:$0x1f]
      %v570 = vtanh.pop %v567
      %v571 = vtanh.pop %v569
      %572 = vst.msk [vmem:[#allocation3 + $0x28] sm:$0xff] %vm282, %v570
      %573 = vst.msk [vmem:[#allocation3 + $0x30] sm:$0x1f] %vm564, %v571
      %s574 = scalar_lea.vmem [#allocation3], 6
      %v575 = vld [vmem:[%s574] ss:$2 sm:$0xff]
      %s576 = scalar_lea.vmem [#allocation3], 22
      %v577 = vld [vmem:[%s576] ss:$2 sm:$0xff]
      %s578 = scalar_lea.vmem [#allocation3], 38
      %v579 = vld [vmem:[%s578] ss:$2 sm:$0xff]
      %s580 = scalar_lea.vmem [#allocation3], 54
      %v581 = vld [vmem:[%s580] ss:$2 sm:$0xff]
      %v582 = vld [vmem:[%s2] sm:$0xff]
      %v583 = vld [vmem:[%s2 + $0x8] sm:$0xff]
      %v584 = vld [vmem:[%s2 + $0x10] sm:$0xff]
      %v585 = vld [vmem:[%s2 + $0x18] sm:$0xff]
      %v586 = vld [vmem:[%s2 + $0x20] sm:$0xff]
      %v587 = vld [vmem:[%s2 + $0x28] sm:$0xff]
      %v588 = vld [vmem:[%s2 + $0x30] sm:$0xff]
      %v589 = vld [vmem:[%s2 + $0x38] sm:$0xff]
      %s590 = scalar_lea.vmem [#allocation3], 7
      %v591 = vld [vmem:[%s590] ss:$2 sm:$0xff]
      %s592 = scalar_lea.vmem [#allocation3], 23
      %v593 = vld [vmem:[%s592] ss:$2 sm:$0xff]
      %s594 = scalar_lea.vmem [#allocation3], 39
      %v595 = vld [vmem:[%s594] ss:$2 sm:$0xff]
      %s596 = scalar_lea.vmem [#allocation3], 55
      %v597 = vld [vmem:[%s596] ss:$2 sm:$0xff]
      %v598 = vld [vmem:[%s2 + $0x40] sm:$0xff]
      %v599 = vld [vmem:[%s2 + $0x48] sm:$0xff]
      %v600 = vld [vmem:[%s2 + $0x50] sm:$0xff]
      %v601 = vld [vmem:[%s2 + $0x58] sm:$0xff]
      %v602 = vld [vmem:[%s2 + $0x60] sm:$0xff]
      %v603 = vld [vmem:[%s2 + $0x68] sm:$0xff]
      %v604 = vld [vmem:[%s2 + $0x70] sm:$0xff]
      %v605 = vld [vmem:[%s2 + $0x78] sm:$0xff]
      %v607 = vsel %vm282, %v591, 0
      %v610 = vsel %vm282, %v593, 0
      %v613 = vsel %vm282, %v595, 0
      %v616 = vsel %vm282, %v597, 0
      %618 = vmatprep.subr.mxu0 0.0
      %619 = vmatpush1.msra.mxu0 %v598
      %620 = vmatprep.subr.mxu0 0.0
      %621 = vmatpush1.msra.mxu0 %v599
      %622 = vmatprep.subr.mxu0 0.0
      %623 = vmatpush1.msra.mxu0 %v600
      %624 = vmatprep.subr.mxu0 0.0
      %625 = vmatpush1.msra.mxu0 %v601
      %626 = vmatprep.subr.mxu0 0.0
      %627 = vmatpush1.msra.mxu0 %v602
      %628 = vmatprep.subr.mxu0 0.0
      %629 = vmatpush1.msra.mxu0 %v603
      %630 = vmatprep.subr.mxu0 0.0
      %631 = vmatpush1.msra.mxu0 %v604
      %632 = vmatprep.subr.mxu0 0.0
      %633 = vmatpush1.msra.mxu0 %v605
      %634 = vmatprep.subr.mxu0 0.0
      %635 = vmatpush1.msra.mxu0 0.0
      %636 = vmatprep.subr.mxu0 0.0
      %637 = vmatpush1.msra.mxu0 0.0
      %638 = vmatprep.subr.mxu0 0.0
      %639 = vmatpush1.msra.mxu0 0.0
      %640 = vmatprep.subr.mxu0 0.0
      %641 = vmatpush1.msra.mxu0 0.0
      %642 = vmatprep.subr.mxu0 0.0
      %643 = vmatpush1.msra.mxu0 0.0
      %644 = vmatprep.subr.mxu0 0.0
      %645 = vmatpush1.msra.mxu0 0.0
      %646 = vmatprep.subr.mxu0 0.0
      %647 = vmatpush1.msra.mxu0 0.0
      %648 = vmatprep.subr.mxu0 0.0
      %649 = vmatpush1.msra.mxu0 0.0
      %650 = vmatprep.subr.mxu0 0.0
      %651 = vmatpush1.msra.mxu0 0.0
      %652 = vmatprep.subr.mxu0 0.0
      %653 = vmatpush1.msra.mxu0 0.0
      %654 = vmatprep.subr.mxu0 0.0
      %655 = vmatpush1.msra.mxu0 0.0
      %656 = vmatprep.subr.mxu0 0.0
      %657 = vmatpush1.msra.mxu0 0.0
      %658 = vmatprep.subr.mxu0 0.0
      %659 = vmatpush1.msra.mxu0 0.0
      %660 = vmatprep.subr.mxu0 0.0
      %661 = vmatpush1.msra.mxu0 0.0
      %662 = vmatprep.subr.mxu0 0.0
      %663 = vmatpush1.msra.mxu0 0.0
      %664 = vmatprep.subr.mxu0 0.0
      %665 = vmatpush1.msra.mxu0 0.0
      %666 = vmatprep.subr.mxu0 0.0
      %667 = vmatpush1.msra.mxu0 0.0
      %668 = vmatprep.subr.mxu0 0.0
      %669 = vmatpush1.msra.mxu0 0.0
      %670 = vmatprep.subr.mxu0 0.0
      %671 = vmatpush1.msra.mxu0 0.0
      %672 = vmatprep.subr.mxu0 0.0
      %673 = vmatpush1.msra.mxu0 0.0
      %674 = vmatprep.subr.mxu0 0.0
      %675 = vmatpush1.msra.mxu0 0.0
      %676 = vmatprep.subr.mxu0 0.0
      %677 = vmatpush1.msra.mxu0 0.0
      %678 = vmatprep.subr.mxu0 0.0
      %679 = vmatpush1.msra.mxu0 0.0
      %680 = vmatprep.subr.mxu0 0.0
      %681 = vmatpush1.msra.mxu0 0.0
      %682 = vmatprep.mubr.f32.mxu0 0.0
      %683 = vmatmul.mubr.f32.gmra.mrb[0].mxu0 %v607
      %v684 = vpop.f32.mrb[0].mxu0
      %v685 = vadd.f32 0.0, %v684
      %v686 = vpop.f32.mrb[0].mxu0
      %687 = vmatprep.mubr.f32.mxu0 0.0
      %688 = vmatmul.mubr.f32.gmra.mrb[0].mxu0 %v610
      %v689 = vpop.f32.mrb[0].mxu0
      %v690 = vpop.f32.mrb[0].mxu0
      %691 = vmatprep.mubr.f32.mxu0 0.0
      %692 = vmatmul.mubr.f32.gmra.mrb[0].mxu0 %v613
      %v693 = vpop.f32.mrb[0].mxu0
      %v694 = vadd.f32 0.0, %v693
      %v695 = vpop.f32.mrb[0].mxu0
      %696 = vmatprep.mubr.f32.mxu0 0.0
      %697 = vmatmul.mubr.f32.gmra.mrb[0].mxu0 %v616
      %v698 = vpop.f32.mrb[0].mxu0
      %v699 = vpop.f32.mrb[0].mxu0
      %700 = vdwg.mxu0
      %v702 = vsel %vm282, %v575, 0
      %v705 = vsel %vm282, %v577, 0
      %v708 = vsel %vm282, %v579, 0
      %v711 = vsel %vm282, %v581, 0
      %713 = vmatprep.subr.mxu0 0.0
      %714 = vmatpush1.msra.mxu0 %v582
      %715 = vmatprep.subr.mxu0 0.0
      %716 = vmatpush1.msra.mxu0 %v583
      %717 = vmatprep.subr.mxu0 0.0
      %718 = vmatpush1.msra.mxu0 %v584
      %719 = vmatprep.subr.mxu0 0.0
      %720 = vmatpush1.msra.mxu0 %v585
      %721 = vmatprep.subr.mxu0 0.0
      %722 = vmatpush1.msra.mxu0 %v586
      %723 = vmatprep.subr.mxu0 0.0
      %724 = vmatpush1.msra.mxu0 %v587
      %725 = vmatprep.subr.mxu0 0.0
      %726 = vmatpush1.msra.mxu0 %v588
      %727 = vmatprep.subr.mxu0 0.0
      %728 = vmatpush1.msra.mxu0 %v589
      %729 = vmatprep.subr.mxu0 0.0
      %730 = vmatpush1.msra.mxu0 0.0
      %731 = vmatprep.subr.mxu0 0.0
      %732 = vmatpush1.msra.mxu0 0.0
      %733 = vmatprep.subr.mxu0 0.0
      %734 = vmatpush1.msra.mxu0 0.0
      %735 = vmatprep.subr.mxu0 0.0
      %736 = vmatpush1.msra.mxu0 0.0
      %737 = vmatprep.subr.mxu0 0.0
      %738 = vmatpush1.msra.mxu0 0.0
      %739 = vmatprep.subr.mxu0 0.0
      %740 = vmatpush1.msra.mxu0 0.0
      %741 = vmatprep.subr.mxu0 0.0
      %742 = vmatpush1.msra.mxu0 0.0
      %743 = vmatprep.subr.mxu0 0.0
      %744 = vmatpush1.msra.mxu0 0.0
      %745 = vmatprep.subr.mxu0 0.0
      %746 = vmatpush1.msra.mxu0 0.0
      %747 = vmatprep.subr.mxu0 0.0
      %748 = vmatpush1.msra.mxu0 0.0
      %749 = vmatprep.subr.mxu0 0.0
      %750 = vmatpush1.msra.mxu0 0.0
      %751 = vmatprep.subr.mxu0 0.0
      %752 = vmatpush1.msra.mxu0 0.0
      %753 = vmatprep.subr.mxu0 0.0
      %754 = vmatpush1.msra.mxu0 0.0
      %755 = vmatprep.subr.mxu0 0.0
      %756 = vmatpush1.msra.mxu0 0.0
      %757 = vmatprep.subr.mxu0 0.0
      %758 = vmatpush1.msra.mxu0 0.0
      %759 = vmatprep.subr.mxu0 0.0
      %760 = vmatpush1.msra.mxu0 0.0
      %761 = vmatprep.subr.mxu0 0.0
      %762 = vmatpush1.msra.mxu0 0.0
      %763 = vmatprep.subr.mxu0 0.0
      %764 = vmatpush1.msra.mxu0 0.0
      %765 = vmatprep.subr.mxu0 0.0
      %766 = vmatpush1.msra.mxu0 0.0
      %767 = vmatprep.subr.mxu0 0.0
      %768 = vmatpush1.msra.mxu0 0.0
      %769 = vmatprep.subr.mxu0 0.0
      %770 = vmatpush1.msra.mxu0 0.0
      %771 = vmatprep.subr.mxu0 0.0
      %772 = vmatpush1.msra.mxu0 0.0
      %773 = vmatprep.subr.mxu0 0.0
      %774 = vmatpush1.msra.mxu0 0.0
      %775 = vmatprep.subr.mxu0 0.0
      %776 = vmatpush1.msra.mxu0 0.0
      %777 = vmatprep.mubr.f32.mxu0 0.0
      %778 = vmatmul.mubr.f32.gmra.mrb[0].mxu0 %v702
      %v779 = vpop.f32.mrb[0].mxu0
      %v780 = vadd.f32 %v685, %v779
      %v781 = vpop.f32.mrb[0].mxu0
      %782 = vmatprep.mubr.f32.mxu0 0.0
      %783 = vmatmul.mubr.f32.gmra.mrb[0].mxu0 %v705
      %v784 = vpop.f32.mrb[0].mxu0
      %v785 = vpop.f32.mrb[0].mxu0
      %786 = vmatprep.mubr.f32.mxu0 0.0
      %787 = vmatmul.mubr.f32.gmra.mrb[0].mxu0 %v708
      %v788 = vpop.f32.mrb[0].mxu0
      %v789 = vadd.f32 %v694, %v788
      %v790 = vpop.f32.mrb[0].mxu0
      %791 = vmatprep.mubr.f32.mxu0 0.0
      %792 = vmatmul.mubr.f32.gmra.mrb[0].mxu0 %v711
      %v793 = vpop.f32.mrb[0].mxu0
      %v794 = vpop.f32.mrb[0].mxu0
      %795 = vdwg.mxu0
      %s796 = scalar_lea.vmem [#allocation3], 8
      %v797 = vld [vmem:[%s796] ss:$2 sm:$0xff]
      %s798 = scalar_lea.vmem [#allocation3], 24
      %v799 = vld [vmem:[%s798] ss:$2 sm:$0xff]
      %s800 = scalar_lea.vmem [#allocation3], 40
      %v801 = vld [vmem:[%s800] ss:$2 sm:$0xff]
      %s802 = scalar_lea.vmem [#allocation3], 56
      %v803 = vld [vmem:[%s802] ss:$2 sm:$0xff]
      %v804 = vld [vmem:[%s2 + $0x80] sm:$0xff]
      %v805 = vld [vmem:[%s2 + $0x88] sm:$0xff]
      %v806 = vld [vmem:[%s2 + $0x90] sm:$0xff]
      %v807 = vld [vmem:[%s2 + $0x98] sm:$0xff]
      %v808 = vld [vmem:[%s2 + $0xa0] sm:$0xff]
      %v809 = vld [vmem:[%s2 + $0xa8] sm:$0xff]
      %v810 = vld [vmem:[%s2 + $0xb0] sm:$0xff]
      %v811 = vld [vmem:[%s2 + $0xb8] sm:$0xff]
      %v813 = vsel %vm282, %v797, 0
      %v816 = vsel %vm282, %v799, 0
      %v819 = vsel %vm282, %v801, 0
      %v822 = vsel %vm282, %v803, 0
      %824 = vmatprep.subr.mxu0 0.0
      %825 = vmatpush1.msra.mxu0 %v804
      %826 = vmatprep.subr.mxu0 0.0
      %827 = vmatpush1.msra.mxu0 %v805
      %828 = vmatprep.subr.mxu0 0.0
      %829 = vmatpush1.msra.mxu0 %v806
      %830 = vmatprep.subr.mxu0 0.0
      %831 = vmatpush1.msra.mxu0 %v807
      %832 = vmatprep.subr.mxu0 0.0
      %833 = vmatpush1.msra.mxu0 %v808
      %834 = vmatprep.subr.mxu0 0.0
      %835 = vmatpush1.msra.mxu0 %v809
      %836 = vmatprep.subr.mxu0 0.0
      %837 = vmatpush1.msra.mxu0 %v810
      %838 = vmatprep.subr.mxu0 0.0
      %839 = vmatpush1.msra.mxu0 %v811
      %840 = vmatprep.subr.mxu0 0.0
      %841 = vmatpush1.msra.mxu0 0.0
      %842 = vmatprep.subr.mxu0 0.0
      %843 = vmatpush1.msra.mxu0 0.0
      %844 = vmatprep.subr.mxu0 0.0
      %845 = vmatpush1.msra.mxu0 0.0
      %846 = vmatprep.subr.mxu0 0.0
      %847 = vmatpush1.msra.mxu0 0.0
      %848 = vmatprep.subr.mxu0 0.0
      %849 = vmatpush1.msra.mxu0 0.0
      %850 = vmatprep.subr.mxu0 0.0
      %851 = vmatpush1.msra.mxu0 0.0
      %852 = vmatprep.subr.mxu0 0.0
      %853 = vmatpush1.msra.mxu0 0.0
      %854 = vmatprep.subr.mxu0 0.0
      %855 = vmatpush1.msra.mxu0 0.0
      %856 = vmatprep.subr.mxu0 0.0
      %857 = vmatpush1.msra.mxu0 0.0
      %858 = vmatprep.subr.mxu0 0.0
      %859 = vmatpush1.msra.mxu0 0.0
      %860 = vmatprep.subr.mxu0 0.0
      %861 = vmatpush1.msra.mxu0 0.0
      %862 = vmatprep.subr.mxu0 0.0
      %863 = vmatpush1.msra.mxu0 0.0
      %864 = vmatprep.subr.mxu0 0.0
      %865 = vmatpush1.msra.mxu0 0.0
      %866 = vmatprep.subr.mxu0 0.0
      %867 = vmatpush1.msra.mxu0 0.0
      %868 = vmatprep.subr.mxu0 0.0
      %869 = vmatpush1.msra.mxu0 0.0
      %870 = vmatprep.subr.mxu0 0.0
      %871 = vmatpush1.msra.mxu0 0.0
      %872 = vmatprep.subr.mxu0 0.0
      %873 = vmatpush1.msra.mxu0 0.0
      %874 = vmatprep.subr.mxu0 0.0
      %875 = vmatpush1.msra.mxu0 0.0
      %876 = vmatprep.subr.mxu0 0.0
      %877 = vmatpush1.msra.mxu0 0.0
      %878 = vmatprep.subr.mxu0 0.0
      %879 = vmatpush1.msra.mxu0 0.0
      %880 = vmatprep.subr.mxu0 0.0
      %881 = vmatpush1.msra.mxu0 0.0
      %882 = vmatprep.subr.mxu0 0.0
      %883 = vmatpush1.msra.mxu0 0.0
      %884 = vmatprep.subr.mxu0 0.0
      %885 = vmatpush1.msra.mxu0 0.0
      %886 = vmatprep.subr.mxu0 0.0
      %887 = vmatpush1.msra.mxu0 0.0
      %888 = vmatprep.mubr.f32.mxu0 0.0
      %889 = vmatmul.mubr.f32.gmra.mrb[0].mxu0 %v813
      %v890 = vpop.f32.mrb[0].mxu0
      %v891 = vadd.f32 0.0, %v890
      %v892 = vpop.f32.mrb[0].mxu0
      %893 = vmatprep.mubr.f32.mxu0 0.0
      %894 = vmatmul.mubr.f32.gmra.mrb[0].mxu0 %v816
      %v895 = vpop.f32.mrb[0].mxu0
      %v896 = vpop.f32.mrb[0].mxu0
      %897 = vmatprep.mubr.f32.mxu0 0.0
      %898 = vmatmul.mubr.f32.gmra.mrb[0].mxu0 %v819
      %v899 = vpop.f32.mrb[0].mxu0
      %v900 = vadd.f32 0.0, %v899
      %v901 = vpop.f32.mrb[0].mxu0
      %902 = vmatprep.mubr.f32.mxu0 0.0
      %903 = vmatmul.mubr.f32.gmra.mrb[0].mxu0 %v822
      %v904 = vpop.f32.mrb[0].mxu0
      %v905 = vpop.f32.mrb[0].mxu0
      %906 = vdwg.mxu0
      %v907 = vadd.f32 %v780, %v891
      %v908 = vadd.f32 %v789, %v900
      %s909 = scalar_lea.vmem [#allocation3], 9
      %v910 = vld [vmem:[%s909] ss:$2 sm:$0xff]
      %s911 = scalar_lea.vmem [#allocation3], 25
      %v912 = vld [vmem:[%s911] ss:$2 sm:$0xff]
      %s913 = scalar_lea.vmem [#allocation3], 41
      %v914 = vld [vmem:[%s913] ss:$2 sm:$0xff]
      %s915 = scalar_lea.vmem [#allocation3], 57
      %v916 = vld [vmem:[%s915] ss:$2 sm:$0xff]
      %v917 = vld [vmem:[%s2 + $0xc0] sm:$0xff]
      %v918 = vld [vmem:[%s2 + $0xc8] sm:$0xff]
      %v919 = vld [vmem:[%s2 + $0xd0] sm:$0xff]
      %v920 = vld [vmem:[%s2 + $0xd8] sm:$0xff]
      %v921 = vld [vmem:[%s2 + $0xe0] sm:$0xff]
      %v922 = vld [vmem:[%s2 + $0xe8] sm:$0xff]
      %v923 = vld [vmem:[%s2 + $0xf0] sm:$0xff]
      %v924 = vld [vmem:[%s2 + $0xf8] sm:$0xff]
      %v926 = vsel %vm282, %v910, 0
      %v929 = vsel %vm282, %v912, 0
      %v932 = vsel %vm282, %v914, 0
      %v935 = vsel %vm282, %v916, 0
      %937 = vmatprep.subr.mxu0 0.0
      %938 = vmatpush1.msra.mxu0 %v917
      %939 = vmatprep.subr.mxu0 0.0
      %940 = vmatpush1.msra.mxu0 %v918
      %941 = vmatprep.subr.mxu0 0.0
      %942 = vmatpush1.msra.mxu0 %v919
      %943 = vmatprep.subr.mxu0 0.0
      %944 = vmatpush1.msra.mxu0 %v920
      %945 = vmatprep.subr.mxu0 0.0
      %946 = vmatpush1.msra.mxu0 %v921
      %947 = vmatprep.subr.mxu0 0.0
      %948 = vmatpush1.msra.mxu0 %v922
      %949 = vmatprep.subr.mxu0 0.0
      %950 = vmatpush1.msra.mxu0 %v923
      %951 = vmatprep.subr.mxu0 0.0
      %952 = vmatpush1.msra.mxu0 %v924
      %953 = vmatprep.subr.mxu0 0.0
      %954 = vmatpush1.msra.mxu0 0.0
      %955 = vmatprep.subr.mxu0 0.0
      %956 = vmatpush1.msra.mxu0 0.0
      %957 = vmatprep.subr.mxu0 0.0
      %958 = vmatpush1.msra.mxu0 0.0
      %959 = vmatprep.subr.mxu0 0.0
      %960 = vmatpush1.msra.mxu0 0.0
      %961 = vmatprep.subr.mxu0 0.0
      %962 = vmatpush1.msra.mxu0 0.0
      %963 = vmatprep.subr.mxu0 0.0
      %964 = vmatpush1.msra.mxu0 0.0
      %965 = vmatprep.subr.mxu0 0.0
      %966 = vmatpush1.msra.mxu0 0.0
      %967 = vmatprep.subr.mxu0 0.0
      %968 = vmatpush1.msra.mxu0 0.0
      %969 = vmatprep.subr.mxu0 0.0
      %970 = vmatpush1.msra.mxu0 0.0
      %971 = vmatprep.subr.mxu0 0.0
      %972 = vmatpush1.msra.mxu0 0.0
      %973 = vmatprep.subr.mxu0 0.0
      %974 = vmatpush1.msra.mxu0 0.0
      %975 = vmatprep.subr.mxu0 0.0
      %976 = vmatpush1.msra.mxu0 0.0
      %977 = vmatprep.subr.mxu0 0.0
      %978 = vmatpush1.msra.mxu0 0.0
      %979 = vmatprep.subr.mxu0 0.0
      %980 = vmatpush1.msra.mxu0 0.0
      %981 = vmatprep.subr.mxu0 0.0
      %982 = vmatpush1.msra.mxu0 0.0
      %983 = vmatprep.subr.mxu0 0.0
      %984 = vmatpush1.msra.mxu0 0.0
      %985 = vmatprep.subr.mxu0 0.0
      %986 = vmatpush1.msra.mxu0 0.0
      %987 = vmatprep.subr.mxu0 0.0
      %988 = vmatpush1.msra.mxu0 0.0
      %989 = vmatprep.subr.mxu0 0.0
      %990 = vmatpush1.msra.mxu0 0.0
      %991 = vmatprep.subr.mxu0 0.0
      %992 = vmatpush1.msra.mxu0 0.0
      %993 = vmatprep.subr.mxu0 0.0
      %994 = vmatpush1.msra.mxu0 0.0
      %995 = vmatprep.subr.mxu0 0.0
      %996 = vmatpush1.msra.mxu0 0.0
      %997 = vmatprep.subr.mxu0 0.0
      %998 = vmatpush1.msra.mxu0 0.0
      %999 = vmatprep.subr.mxu0 0.0
      %1000 = vmatpush1.msra.mxu0 0.0
      %1001 = vmatprep.mubr.f32.mxu0 0.0
      %1002 = vmatmul.mubr.f32.gmra.mrb[0].mxu0 %v926
      %v1003 = vpop.f32.mrb[0].mxu0
      %v1004 = vadd.f32 0.0, %v1003
      %v1005 = vpop.f32.mrb[0].mxu0
      %1006 = vmatprep.mubr.f32.mxu0 0.0
      %1007 = vmatmul.mubr.f32.gmra.mrb[0].mxu0 %v929
      %v1008 = vpop.f32.mrb[0].mxu0
      %v1009 = vpop.f32.mrb[0].mxu0
      %1010 = vmatprep.mubr.f32.mxu0 0.0
      %1011 = vmatmul.mubr.f32.gmra.mrb[0].mxu0 %v932
      %v1012 = vpop.f32.mrb[0].mxu0
      %v1013 = vadd.f32 0.0, %v1012
      %v1014 = vpop.f32.mrb[0].mxu0
      %1015 = vmatprep.mubr.f32.mxu0 0.0
      %1016 = vmatmul.mubr.f32.gmra.mrb[0].mxu0 %v935
      %v1017 = vpop.f32.mrb[0].mxu0
      %v1018 = vpop.f32.mrb[0].mxu0
      %1019 = vdwg.mxu0
      %v1020 = vadd.f32 %v907, %v1004
      %v1021 = vadd.f32 %v908, %v1013
      %s1022 = scalar_lea.vmem [#allocation3], 10
      %v1023 = vld [vmem:[%s1022] ss:$2 sm:$0xff]
      %s1024 = scalar_lea.vmem [#allocation3], 26
      %v1025 = vld [vmem:[%s1024] ss:$2 sm:$0xff]
      %s1026 = scalar_lea.vmem [#allocation3], 42
      %v1027 = vld [vmem:[%s1026] ss:$2 sm:$0xff]
      %s1028 = scalar_lea.vmem [#allocation3], 58
      %v1029 = vld [vmem:[%s1028] ss:$2 sm:$0xff]
      %v1030 = vld [vmem:[%s2 + $0x100] sm:$0xff]
      %v1031 = vld [vmem:[%s2 + $0x108] sm:$0xff]
      %v1032 = vld [vmem:[%s2 + $0x110] sm:$0xff]
      %v1033 = vld [vmem:[%s2 + $0x118] sm:$0xff]
      %v1034 = vld [vmem:[%s2 + $0x120] sm:$0xff]
      %v1035 = vld [vmem:[%s2 + $0x128] sm:$0xff]
      %v1036 = vld [vmem:[%s2 + $0x130] sm:$0xff]
      %v1037 = vld [vmem:[%s2 + $0x138] sm:$0xff]
      %v1039 = vsel %vm282, %v1023, 0
      %v1042 = vsel %vm282, %v1025, 0
      %v1045 = vsel %vm282, %v1027, 0
      %v1048 = vsel %vm282, %v1029, 0
      %1050 = vmatprep.subr.mxu0 0.0
      %1051 = vmatpush1.msra.mxu0 %v1030
      %1052 = vmatprep.subr.mxu0 0.0
      %1053 = vmatpush1.msra.mxu0 %v1031
      %1054 = vmatprep.subr.mxu0 0.0
      %1055 = vmatpush1.msra.mxu0 %v1032
      %1056 = vmatprep.subr.mxu0 0.0
      %1057 = vmatpush1.msra.mxu0 %v1033
      %1058 = vmatprep.subr.mxu0 0.0
      %1059 = vmatpush1.msra.mxu0 %v1034
      %1060 = vmatprep.subr.mxu0 0.0
      %1061 = vmatpush1.msra.mxu0 %v1035
      %1062 = vmatprep.subr.mxu0 0.0
      %1063 = vmatpush1.msra.mxu0 %v1036
      %1064 = vmatprep.subr.mxu0 0.0
      %1065 = vmatpush1.msra.mxu0 %v1037
      %1066 = vmatprep.subr.mxu0 0.0
      %1067 = vmatpush1.msra.mxu0 0.0
      %1068 = vmatprep.subr.mxu0 0.0
      %1069 = vmatpush1.msra.mxu0 0.0
      %1070 = vmatprep.subr.mxu0 0.0
      %1071 = vmatpush1.msra.mxu0 0.0
      %1072 = vmatprep.subr.mxu0 0.0
      %1073 = vmatpush1.msra.mxu0 0.0
      %1074 = vmatprep.subr.mxu0 0.0
      %1075 = vmatpush1.msra.mxu0 0.0
      %1076 = vmatprep.subr.mxu0 0.0
      %1077 = vmatpush1.msra.mxu0 0.0
      %1078 = vmatprep.subr.mxu0 0.0
      %1079 = vmatpush1.msra.mxu0 0.0
      %1080 = vmatprep.subr.mxu0 0.0
      %1081 = vmatpush1.msra.mxu0 0.0
      %1082 = vmatprep.subr.mxu0 0.0
      %1083 = vmatpush1.msra.mxu0 0.0
      %1084 = vmatprep.subr.mxu0 0.0
      %1085 = vmatpush1.msra.mxu0 0.0
      %1086 = vmatprep.subr.mxu0 0.0
      %1087 = vmatpush1.msra.mxu0 0.0
      %1088 = vmatprep.subr.mxu0 0.0
      %1089 = vmatpush1.msra.mxu0 0.0
      %1090 = vmatprep.subr.mxu0 0.0
      %1091 = vmatpush1.msra.mxu0 0.0
      %1092 = vmatprep.subr.mxu0 0.0
      %1093 = vmatpush1.msra.mxu0 0.0
      %1094 = vmatprep.subr.mxu0 0.0
      %1095 = vmatpush1.msra.mxu0 0.0
      %1096 = vmatprep.subr.mxu0 0.0
      %1097 = vmatpush1.msra.mxu0 0.0
      %1098 = vmatprep.subr.mxu0 0.0
      %1099 = vmatpush1.msra.mxu0 0.0
      %1100 = vmatprep.subr.mxu0 0.0
      %1101 = vmatpush1.msra.mxu0 0.0
      %1102 = vmatprep.subr.mxu0 0.0
      %1103 = vmatpush1.msra.mxu0 0.0
      %1104 = vmatprep.subr.mxu0 0.0
      %1105 = vmatpush1.msra.mxu0 0.0
      %1106 = vmatprep.subr.mxu0 0.0
      %1107 = vmatpush1.msra.mxu0 0.0
      %1108 = vmatprep.subr.mxu0 0.0
      %1109 = vmatpush1.msra.mxu0 0.0
      %1110 = vmatprep.subr.mxu0 0.0
      %1111 = vmatpush1.msra.mxu0 0.0
      %1112 = vmatprep.subr.mxu0 0.0
      %1113 = vmatpush1.msra.mxu0 0.0
      %1114 = vmatprep.mubr.f32.mxu0 0.0
      %1115 = vmatmul.mubr.f32.gmra.mrb[0].mxu0 %v1039
      %v1116 = vpop.f32.mrb[0].mxu0
      %v1117 = vadd.f32 0.0, %v1116
      %v1118 = vpop.f32.mrb[0].mxu0
      %1119 = vmatprep.mubr.f32.mxu0 0.0
      %1120 = vmatmul.mubr.f32.gmra.mrb[0].mxu0 %v1042
      %v1121 = vpop.f32.mrb[0].mxu0
      %v1122 = vpop.f32.mrb[0].mxu0
      %1123 = vmatprep.mubr.f32.mxu0 0.0
      %1124 = vmatmul.mubr.f32.gmra.mrb[0].mxu0 %v1045
      %v1125 = vpop.f32.mrb[0].mxu0
      %v1126 = vadd.f32 0.0, %v1125
      %v1127 = vpop.f32.mrb[0].mxu0
      %1128 = vmatprep.mubr.f32.mxu0 0.0
      %1129 = vmatmul.mubr.f32.gmra.mrb[0].mxu0 %v1048
      %v1130 = vpop.f32.mrb[0].mxu0
      %v1131 = vpop.f32.mrb[0].mxu0
      %1132 = vdwg.mxu0
      %v1133 = vadd.f32 %v1020, %v1117
      %v1134 = vadd.f32 %v1021, %v1126
      %v1135 = vld [vmem:[%s5 + $0x1] sm:$0x1]
      %v1136 = vlaneseq
      %v1137 = vshrl.u32 %v1136, 7
      %v1138 = vsub.s32 0, %v1137
      %v1139 = vrot.slane %v1135, %v1138
      %v1140 = vmul.f32 %v1133, %v1139
      %v1141 = vmul.f32 %v1134, %v1139
      %v1142 = vld [vmem:[%s6 + $0x1] sm:$0x1]
      %v1143 = vlaneseq
      %v1144 = vshrl.u32 %v1143, 7
      %v1145 = vsub.s32 0, %v1144
      %v1146 = vrot.slane %v1142, %v1145
      %v1147 = vadd.f32 %v1140, %v1146
      %v1148 = vadd.f32 %v1141, %v1146
      %v1149 = vtanh.pop %v1147
      %v1150 = vtanh.pop %v1148
      %vm1151 = vcmask 522240
      %1152 = vst.msk [vmem:[#allocation4 + $0x8] sm:$0x7f] %vm1151, %v1149
      %1153 = vst.msk [vmem:[#allocation4 + $0x18] sm:$0x7f] %vm1151, %v1150
      %s1154 = scalar_lea.vmem [#allocation4], 6
      %v1155 = vld [vmem:[%s1154] ss:$2 sm:$0xff]
      %s1156 = scalar_lea.vmem [#allocation4], 22
      %v1157 = vld [vmem:[%s1156] ss:$2 sm:$0xff]
      %v1158 = vld [vmem:[%s3] sm:$0xff]
      %v1159 = vld [vmem:[%s3 + $0x8] sm:$0xff]
      %v1160 = vld [vmem:[%s3 + $0x10] sm:$0xff]
      %v1161 = vld [vmem:[%s3 + $0x18] sm:$0xff]
      %v1162 = vld [vmem:[%s3 + $0x20] sm:$0xff]
      %v1163 = vld [vmem:[%s3 + $0x28] sm:$0xff]
      %v1164 = vld [vmem:[%s3 + $0x30] sm:$0xff]
      %v1165 = vld [vmem:[%s3 + $0x38] sm:$0xff]
      %s1166 = scalar_lea.vmem [#allocation4], 7
      %v1167 = vld [vmem:[%s1166] ss:$2 sm:$0xff]
      %s1168 = scalar_lea.vmem [#allocation4], 23
      %v1169 = vld [vmem:[%s1168] ss:$2 sm:$0xff]
      %v1170 = vld [vmem:[%s3 + $0x40] sm:$0xff]
      %v1171 = vld [vmem:[%s3 + $0x48] sm:$0xff]
      %v1172 = vld [vmem:[%s3 + $0x50] sm:$0xff]
      %v1173 = vld [vmem:[%s3 + $0x58] sm:$0xff]
      %v1174 = vld [vmem:[%s3 + $0x60] sm:$0xff]
      %v1175 = vld [vmem:[%s3 + $0x68] sm:$0xff]
      %v1176 = vld [vmem:[%s3 + $0x70] sm:$0xff]
      %v1177 = vld [vmem:[%s3 + $0x78] sm:$0xff]
      %v1179 = vsel %vm282, %v1167, 0
      %v1182 = vsel %vm282, %v1169, 0
      %1184 = vmatprep.subr.mxu0 0.0
      %1185 = vmatpush1.msra.mxu0 %v1170
      %1186 = vmatprep.subr.mxu0 0.0
      %1187 = vmatpush1.msra.mxu0 %v1171
      %1188 = vmatprep.subr.mxu0 0.0
      %1189 = vmatpush1.msra.mxu0 %v1172
      %1190 = vmatprep.subr.mxu0 0.0
      %1191 = vmatpush1.msra.mxu0 %v1173
      %1192 = vmatprep.subr.mxu0 0.0
      %1193 = vmatpush1.msra.mxu0 %v1174
      %1194 = vmatprep.subr.mxu0 0.0
      %1195 = vmatpush1.msra.mxu0 %v1175
      %1196 = vmatprep.subr.mxu0 0.0
      %1197 = vmatpush1.msra.mxu0 %v1176
      %1198 = vmatprep.subr.mxu0 0.0
      %1199 = vmatpush1.msra.mxu0 %v1177
      %1200 = vmatprep.subr.mxu0 0.0
      %1201 = vmatpush1.msra.mxu0 0.0
      %1202 = vmatprep.subr.mxu0 0.0
      %1203 = vmatpush1.msra.mxu0 0.0
      %1204 = vmatprep.subr.mxu0 0.0
      %1205 = vmatpush1.msra.mxu0 0.0
      %1206 = vmatprep.subr.mxu0 0.0
      %1207 = vmatpush1.msra.mxu0 0.0
      %1208 = vmatprep.subr.mxu0 0.0
      %1209 = vmatpush1.msra.mxu0 0.0
      %1210 = vmatprep.subr.mxu0 0.0
      %1211 = vmatpush1.msra.mxu0 0.0
      %1212 = vmatprep.subr.mxu0 0.0
      %1213 = vmatpush1.msra.mxu0 0.0
      %1214 = vmatprep.subr.mxu0 0.0
      %1215 = vmatpush1.msra.mxu0 0.0
      %1216 = vmatprep.subr.mxu0 0.0
      %1217 = vmatpush1.msra.mxu0 0.0
      %1218 = vmatprep.subr.mxu0 0.0
      %1219 = vmatpush1.msra.mxu0 0.0
      %1220 = vmatprep.subr.mxu0 0.0
      %1221 = vmatpush1.msra.mxu0 0.0
      %1222 = vmatprep.subr.mxu0 0.0
      %1223 = vmatpush1.msra.mxu0 0.0
      %1224 = vmatprep.subr.mxu0 0.0
      %1225 = vmatpush1.msra.mxu0 0.0
      %1226 = vmatprep.subr.mxu0 0.0
      %1227 = vmatpush1.msra.mxu0 0.0
      %1228 = vmatprep.subr.mxu0 0.0
      %1229 = vmatpush1.msra.mxu0 0.0
      %1230 = vmatprep.subr.mxu0 0.0
      %1231 = vmatpush1.msra.mxu0 0.0
      %1232 = vmatprep.subr.mxu0 0.0
      %1233 = vmatpush1.msra.mxu0 0.0
      %1234 = vmatprep.subr.mxu0 0.0
      %1235 = vmatpush1.msra.mxu0 0.0
      %1236 = vmatprep.subr.mxu0 0.0
      %1237 = vmatpush1.msra.mxu0 0.0
      %1238 = vmatprep.subr.mxu0 0.0
      %1239 = vmatpush1.msra.mxu0 0.0
      %1240 = vmatprep.subr.mxu0 0.0
      %1241 = vmatpush1.msra.mxu0 0.0
      %1242 = vmatprep.subr.mxu0 0.0
      %1243 = vmatpush1.msra.mxu0 0.0
      %1244 = vmatprep.subr.mxu0 0.0
      %1245 = vmatpush1.msra.mxu0 0.0
      %1246 = vmatprep.subr.mxu0 0.0
      %1247 = vmatpush1.msra.mxu0 0.0
      %1248 = vmatprep.mubr.f32.mxu0 0.0
      %1249 = vmatmul.mubr.f32.gmra.mrb[0].mxu0 %v1179
      %v1250 = vpop.f32.mrb[0].mxu0
      %v1251 = vadd.f32 0.0, %v1250
      %v1252 = vpop.f32.mrb[0].mxu0
      %1253 = vmatprep.mubr.f32.mxu0 0.0
      %1254 = vmatmul.mubr.f32.gmra.mrb[0].mxu0 %v1182
      %v1255 = vpop.f32.mrb[0].mxu0
      %v1256 = vadd.f32 0.0, %v1255
      %v1257 = vpop.f32.mrb[0].mxu0
      %1258 = vdwg.mxu0
      %v1260 = vsel %vm282, %v1155, 0
      %v1263 = vsel %vm282, %v1157, 0
      %1265 = vmatprep.subr.mxu0 0.0
      %1266 = vmatpush1.msra.mxu0 %v1158
      %1267 = vmatprep.subr.mxu0 0.0
      %1268 = vmatpush1.msra.mxu0 %v1159
      %1269 = vmatprep.subr.mxu0 0.0
      %1270 = vmatpush1.msra.mxu0 %v1160
      %1271 = vmatprep.subr.mxu0 0.0
      %1272 = vmatpush1.msra.mxu0 %v1161
      %1273 = vmatprep.subr.mxu0 0.0
      %1274 = vmatpush1.msra.mxu0 %v1162
      %1275 = vmatprep.subr.mxu0 0.0
      %1276 = vmatpush1.msra.mxu0 %v1163
      %1277 = vmatprep.subr.mxu0 0.0
      %1278 = vmatpush1.msra.mxu0 %v1164
      %1279 = vmatprep.subr.mxu0 0.0
      %1280 = vmatpush1.msra.mxu0 %v1165
      %1281 = vmatprep.subr.mxu0 0.0
      %1282 = vmatpush1.msra.mxu0 0.0
      %1283 = vmatprep.subr.mxu0 0.0
      %1284 = vmatpush1.msra.mxu0 0.0
      %1285 = vmatprep.subr.mxu0 0.0
      %1286 = vmatpush1.msra.mxu0 0.0
      %1287 = vmatprep.subr.mxu0 0.0
      %1288 = vmatpush1.msra.mxu0 0.0
      %1289 = vmatprep.subr.mxu0 0.0
      %1290 = vmatpush1.msra.mxu0 0.0
      %1291 = vmatprep.subr.mxu0 0.0
      %1292 = vmatpush1.msra.mxu0 0.0
      %1293 = vmatprep.subr.mxu0 0.0
      %1294 = vmatpush1.msra.mxu0 0.0
      %1295 = vmatprep.subr.mxu0 0.0
      %1296 = vmatpush1.msra.mxu0 0.0
      %1297 = vmatprep.subr.mxu0 0.0
      %1298 = vmatpush1.msra.mxu0 0.0
      %1299 = vmatprep.subr.mxu0 0.0
      %1300 = vmatpush1.msra.mxu0 0.0
      %1301 = vmatprep.subr.mxu0 0.0
      %1302 = vmatpush1.msra.mxu0 0.0
      %1303 = vmatprep.subr.mxu0 0.0
      %1304 = vmatpush1.msra.mxu0 0.0
      %1305 = vmatprep.subr.mxu0 0.0
      %1306 = vmatpush1.msra.mxu0 0.0
      %1307 = vmatprep.subr.mxu0 0.0
      %1308 = vmatpush1.msra.mxu0 0.0
      %1309 = vmatprep.subr.mxu0 0.0
      %1310 = vmatpush1.msra.mxu0 0.0
      %1311 = vmatprep.subr.mxu0 0.0
      %1312 = vmatpush1.msra.mxu0 0.0
      %1313 = vmatprep.subr.mxu0 0.0
      %1314 = vmatpush1.msra.mxu0 0.0
      %1315 = vmatprep.subr.mxu0 0.0
      %1316 = vmatpush1.msra.mxu0 0.0
      %1317 = vmatprep.subr.mxu0 0.0
      %1318 = vmatpush1.msra.mxu0 0.0
      %1319 = vmatprep.subr.mxu0 0.0
      %1320 = vmatpush1.msra.mxu0 0.0
      %1321 = vmatprep.subr.mxu0 0.0
      %1322 = vmatpush1.msra.mxu0 0.0
      %1323 = vmatprep.subr.mxu0 0.0
      %1324 = vmatpush1.msra.mxu0 0.0
      %1325 = vmatprep.subr.mxu0 0.0
      %1326 = vmatpush1.msra.mxu0 0.0
      %1327 = vmatprep.subr.mxu0 0.0
      %1328 = vmatpush1.msra.mxu0 0.0
      %1329 = vmatprep.mubr.f32.mxu0 0.0
      %1330 = vmatmul.mubr.f32.gmra.mrb[0].mxu0 %v1260
      %v1331 = vpop.f32.mrb[0].mxu0
      %v1332 = vadd.f32 %v1251, %v1331
      %v1333 = vpop.f32.mrb[0].mxu0
      %1334 = vmatprep.mubr.f32.mxu0 0.0
      %1335 = vmatmul.mubr.f32.gmra.mrb[0].mxu0 %v1263
      %v1336 = vpop.f32.mrb[0].mxu0
      %v1337 = vadd.f32 %v1256, %v1336
      %v1338 = vpop.f32.mrb[0].mxu0
      %1339 = vdwg.mxu0
      %s1340 = scalar_lea.vmem [#allocation4], 8
      %v1341 = vld [vmem:[%s1340] ss:$2 sm:$0xff]
      %s1342 = scalar_lea.vmem [#allocation4], 24
      %v1343 = vld [vmem:[%s1342] ss:$2 sm:$0xff]
      %v1344 = vld [vmem:[%s3 + $0x80] sm:$0xff]
      %v1345 = vld [vmem:[%s3 + $0x88] sm:$0xff]
      %v1346 = vld [vmem:[%s3 + $0x90] sm:$0xff]
      %v1347 = vld [vmem:[%s3 + $0x98] sm:$0xff]
      %v1348 = vld [vmem:[%s3 + $0xa0] sm:$0xff]
      %v1349 = vld [vmem:[%s3 + $0xa8] sm:$0xff]
      %v1350 = vld [vmem:[%s3 + $0xb0] sm:$0xff]
      %v1351 = vld [vmem:[%s3 + $0xb8] sm:$0xff]
      %v1353 = vsel %vm282, %v1341, 0
      %v1356 = vsel %vm282, %v1343, 0
      %1358 = vmatprep.subr.mxu0 0.0
      %1359 = vmatpush1.msra.mxu0 %v1344
      %1360 = vmatprep.subr.mxu0 0.0
      %1361 = vmatpush1.msra.mxu0 %v1345
      %1362 = vmatprep.subr.mxu0 0.0
      %1363 = vmatpush1.msra.mxu0 %v1346
      %1364 = vmatprep.subr.mxu0 0.0
      %1365 = vmatpush1.msra.mxu0 %v1347
      %1366 = vmatprep.subr.mxu0 0.0
      %1367 = vmatpush1.msra.mxu0 %v1348
      %1368 = vmatprep.subr.mxu0 0.0
      %1369 = vmatpush1.msra.mxu0 %v1349
      %1370 = vmatprep.subr.mxu0 0.0
      %1371 = vmatpush1.msra.mxu0 %v1350
      %1372 = vmatprep.subr.mxu0 0.0
      %1373 = vmatpush1.msra.mxu0 %v1351
      %1374 = vmatprep.subr.mxu0 0.0
      %1375 = vmatpush1.msra.mxu0 0.0
      %1376 = vmatprep.subr.mxu0 0.0
      %1377 = vmatpush1.msra.mxu0 0.0
      %1378 = vmatprep.subr.mxu0 0.0
      %1379 = vmatpush1.msra.mxu0 0.0
      %1380 = vmatprep.subr.mxu0 0.0
      %1381 = vmatpush1.msra.mxu0 0.0
      %1382 = vmatprep.subr.mxu0 0.0
      %1383 = vmatpush1.msra.mxu0 0.0
      %1384 = vmatprep.subr.mxu0 0.0
      %1385 = vmatpush1.msra.mxu0 0.0
      %1386 = vmatprep.subr.mxu0 0.0
      %1387 = vmatpush1.msra.mxu0 0.0
      %1388 = vmatprep.subr.mxu0 0.0
      %1389 = vmatpush1.msra.mxu0 0.0
      %1390 = vmatprep.subr.mxu0 0.0
      %1391 = vmatpush1.msra.mxu0 0.0
      %1392 = vmatprep.subr.mxu0 0.0
      %1393 = vmatpush1.msra.mxu0 0.0
      %1394 = vmatprep.subr.mxu0 0.0
      %1395 = vmatpush1.msra.mxu0 0.0
      %1396 = vmatprep.subr.mxu0 0.0
      %1397 = vmatpush1.msra.mxu0 0.0
      %1398 = vmatprep.subr.mxu0 0.0
      %1399 = vmatpush1.msra.mxu0 0.0
      %1400 = vmatprep.subr.mxu0 0.0
      %1401 = vmatpush1.msra.mxu0 0.0
      %1402 = vmatprep.subr.mxu0 0.0
      %1403 = vmatpush1.msra.mxu0 0.0
      %1404 = vmatprep.subr.mxu0 0.0
      %1405 = vmatpush1.msra.mxu0 0.0
      %1406 = vmatprep.subr.mxu0 0.0
      %1407 = vmatpush1.msra.mxu0 0.0
      %1408 = vmatprep.subr.mxu0 0.0
      %1409 = vmatpush1.msra.mxu0 0.0
      %1410 = vmatprep.subr.mxu0 0.0
      %1411 = vmatpush1.msra.mxu0 0.0
      %1412 = vmatprep.subr.mxu0 0.0
      %1413 = vmatpush1.msra.mxu0 0.0
      %1414 = vmatprep.subr.mxu0 0.0
      %1415 = vmatpush1.msra.mxu0 0.0
      %1416 = vmatprep.subr.mxu0 0.0
      %1417 = vmatpush1.msra.mxu0 0.0
      %1418 = vmatprep.subr.mxu0 0.0
      %1419 = vmatpush1.msra.mxu0 0.0
      %1420 = vmatprep.subr.mxu0 0.0
      %1421 = vmatpush1.msra.mxu0 0.0
      %1422 = vmatprep.mubr.f32.mxu0 0.0
      %1423 = vmatmul.mubr.f32.gmra.mrb[0].mxu0 %v1353
      %v1424 = vpop.f32.mrb[0].mxu0
      %v1425 = vadd.f32 0.0, %v1424
      %v1426 = vpop.f32.mrb[0].mxu0
      %1427 = vmatprep.mubr.f32.mxu0 0.0
      %1428 = vmatmul.mubr.f32.gmra.mrb[0].mxu0 %v1356
      %v1429 = vpop.f32.mrb[0].mxu0
      %v1430 = vadd.f32 0.0, %v1429
      %v1431 = vpop.f32.mrb[0].mxu0
      %1432 = vdwg.mxu0
      %v1433 = vadd.f32 %v1332, %v1425
      %v1434 = vadd.f32 %v1337, %v1430
      %s1435 = scalar_lea.vmem [#allocation4], 9
      %v1436 = vld [vmem:[%s1435] ss:$2 sm:$0xff]
      %s1437 = scalar_lea.vmem [#allocation4], 25
      %v1438 = vld [vmem:[%s1437] ss:$2 sm:$0xff]
      %v1439 = vld [vmem:[%s3 + $0xc0] sm:$0xff]
      %v1440 = vld [vmem:[%s3 + $0xc8] sm:$0xff]
      %v1441 = vld [vmem:[%s3 + $0xd0] sm:$0xff]
      %v1442 = vld [vmem:[%s3 + $0xd8] sm:$0xff]
      %v1443 = vld [vmem:[%s3 + $0xe0] sm:$0xff]
      %v1444 = vld [vmem:[%s3 + $0xe8] sm:$0xff]
      %v1445 = vld [vmem:[%s3 + $0xf0] sm:$0xff]
      %v1446 = vld [vmem:[%s3 + $0xf8] sm:$0xff]
      %v1448 = vsel %vm282, %v1436, 0
      %v1451 = vsel %vm282, %v1438, 0
      %1453 = vmatprep.subr.mxu0 0.0
      %1454 = vmatpush1.msra.mxu0 %v1439
      %1455 = vmatprep.subr.mxu0 0.0
      %1456 = vmatpush1.msra.mxu0 %v1440
      %1457 = vmatprep.subr.mxu0 0.0
      %1458 = vmatpush1.msra.mxu0 %v1441
      %1459 = vmatprep.subr.mxu0 0.0
      %1460 = vmatpush1.msra.mxu0 %v1442
      %1461 = vmatprep.subr.mxu0 0.0
      %1462 = vmatpush1.msra.mxu0 %v1443
      %1463 = vmatprep.subr.mxu0 0.0
      %1464 = vmatpush1.msra.mxu0 %v1444
      %1465 = vmatprep.subr.mxu0 0.0
      %1466 = vmatpush1.msra.mxu0 %v1445
      %1467 = vmatprep.subr.mxu0 0.0
      %1468 = vmatpush1.msra.mxu0 %v1446
      %1469 = vmatprep.subr.mxu0 0.0
      %1470 = vmatpush1.msra.mxu0 0.0
      %1471 = vmatprep.subr.mxu0 0.0
      %1472 = vmatpush1.msra.mxu0 0.0
      %1473 = vmatprep.subr.mxu0 0.0
      %1474 = vmatpush1.msra.mxu0 0.0
      %1475 = vmatprep.subr.mxu0 0.0
      %1476 = vmatpush1.msra.mxu0 0.0
      %1477 = vmatprep.subr.mxu0 0.0
      %1478 = vmatpush1.msra.mxu0 0.0
      %1479 = vmatprep.subr.mxu0 0.0
      %1480 = vmatpush1.msra.mxu0 0.0
      %1481 = vmatprep.subr.mxu0 0.0
      %1482 = vmatpush1.msra.mxu0 0.0
      %1483 = vmatprep.subr.mxu0 0.0
      %1484 = vmatpush1.msra.mxu0 0.0
      %1485 = vmatprep.subr.mxu0 0.0
      %1486 = vmatpush1.msra.mxu0 0.0
      %1487 = vmatprep.subr.mxu0 0.0
      %1488 = vmatpush1.msra.mxu0 0.0
      %1489 = vmatprep.subr.mxu0 0.0
      %1490 = vmatpush1.msra.mxu0 0.0
      %1491 = vmatprep.subr.mxu0 0.0
      %1492 = vmatpush1.msra.mxu0 0.0
      %1493 = vmatprep.subr.mxu0 0.0
      %1494 = vmatpush1.msra.mxu0 0.0
      %1495 = vmatprep.subr.mxu0 0.0
      %1496 = vmatpush1.msra.mxu0 0.0
      %1497 = vmatprep.subr.mxu0 0.0
      %1498 = vmatpush1.msra.mxu0 0.0
      %1499 = vmatprep.subr.mxu0 0.0
      %1500 = vmatpush1.msra.mxu0 0.0
      %1501 = vmatprep.subr.mxu0 0.0
      %1502 = vmatpush1.msra.mxu0 0.0
      %1503 = vmatprep.subr.mxu0 0.0
      %1504 = vmatpush1.msra.mxu0 0.0
      %1505 = vmatprep.subr.mxu0 0.0
      %1506 = vmatpush1.msra.mxu0 0.0
      %1507 = vmatprep.subr.mxu0 0.0
      %1508 = vmatpush1.msra.mxu0 0.0
      %1509 = vmatprep.subr.mxu0 0.0
      %1510 = vmatpush1.msra.mxu0 0.0
      %1511 = vmatprep.subr.mxu0 0.0
      %1512 = vmatpush1.msra.mxu0 0.0
      %1513 = vmatprep.subr.mxu0 0.0
      %1514 = vmatpush1.msra.mxu0 0.0
      %1515 = vmatprep.subr.mxu0 0.0
      %1516 = vmatpush1.msra.mxu0 0.0
      %1517 = vmatprep.mubr.f32.mxu0 0.0
      %1518 = vmatmul.mubr.f32.gmra.mrb[0].mxu0 %v1448
      %v1519 = vpop.f32.mrb[0].mxu0
      %v1520 = vadd.f32 0.0, %v1519
      %v1521 = vpop.f32.mrb[0].mxu0
      %1522 = vmatprep.mubr.f32.mxu0 0.0
      %1523 = vmatmul.mubr.f32.gmra.mrb[0].mxu0 %v1451
      %v1524 = vpop.f32.mrb[0].mxu0
      %v1525 = vadd.f32 0.0, %v1524
      %v1526 = vpop.f32.mrb[0].mxu0
      %1527 = vdwg.mxu0
      %v1528 = vadd.f32 %v1433, %v1520
      %v1529 = vadd.f32 %v1434, %v1525
      %s1530 = scalar_lea.vmem [#allocation4], 10
      %v1531 = vld [vmem:[%s1530] ss:$2 sm:$0xff]
      %s1532 = scalar_lea.vmem [#allocation4], 26
      %v1533 = vld [vmem:[%s1532] ss:$2 sm:$0xff]
      %v1534 = vld [vmem:[%s3 + $0x100] sm:$0xff]
      %v1535 = vld [vmem:[%s3 + $0x108] sm:$0xff]
      %v1536 = vld [vmem:[%s3 + $0x110] sm:$0xff]
      %v1537 = vld [vmem:[%s3 + $0x118] sm:$0xff]
      %v1538 = vld [vmem:[%s3 + $0x120] sm:$0xff]
      %v1539 = vld [vmem:[%s3 + $0x128] sm:$0xff]
      %v1540 = vld [vmem:[%s3 + $0x130] sm:$0xff]
      %v1541 = vld [vmem:[%s3 + $0x138] sm:$0xff]
      %v1543 = vsel %vm282, %v1531, 0
      %v1546 = vsel %vm282, %v1533, 0
      %1548 = vmatprep.subr.mxu0 0.0
      %1549 = vmatpush1.msra.mxu0 %v1534
      %1550 = vmatprep.subr.mxu0 0.0
      %1551 = vmatpush1.msra.mxu0 %v1535
      %1552 = vmatprep.subr.mxu0 0.0
      %1553 = vmatpush1.msra.mxu0 %v1536
      %1554 = vmatprep.subr.mxu0 0.0
      %1555 = vmatpush1.msra.mxu0 %v1537
      %1556 = vmatprep.subr.mxu0 0.0
      %1557 = vmatpush1.msra.mxu0 %v1538
      %1558 = vmatprep.subr.mxu0 0.0
      %1559 = vmatpush1.msra.mxu0 %v1539
      %1560 = vmatprep.subr.mxu0 0.0
      %1561 = vmatpush1.msra.mxu0 %v1540
      %1562 = vmatprep.subr.mxu0 0.0
      %1563 = vmatpush1.msra.mxu0 %v1541
      %1564 = vmatprep.subr.mxu0 0.0
      %1565 = vmatpush1.msra.mxu0 0.0
      %1566 = vmatprep.subr.mxu0 0.0
      %1567 = vmatpush1.msra.mxu0 0.0
      %1568 = vmatprep.subr.mxu0 0.0
      %1569 = vmatpush1.msra.mxu0 0.0
      %1570 = vmatprep.subr.mxu0 0.0
      %1571 = vmatpush1.msra.mxu0 0.0
      %1572 = vmatprep.subr.mxu0 0.0
      %1573 = vmatpush1.msra.mxu0 0.0
      %1574 = vmatprep.subr.mxu0 0.0
      %1575 = vmatpush1.msra.mxu0 0.0
      %1576 = vmatprep.subr.mxu0 0.0
      %1577 = vmatpush1.msra.mxu0 0.0
      %1578 = vmatprep.subr.mxu0 0.0
      %1579 = vmatpush1.msra.mxu0 0.0
      %1580 = vmatprep.subr.mxu0 0.0
      %1581 = vmatpush1.msra.mxu0 0.0
      %1582 = vmatprep.subr.mxu0 0.0
      %1583 = vmatpush1.msra.mxu0 0.0
      %1584 = vmatprep.subr.mxu0 0.0
      %1585 = vmatpush1.msra.mxu0 0.0
      %1586 = vmatprep.subr.mxu0 0.0
      %1587 = vmatpush1.msra.mxu0 0.0
      %1588 = vmatprep.subr.mxu0 0.0
      %1589 = vmatpush1.msra.mxu0 0.0
      %1590 = vmatprep.subr.mxu0 0.0
      %1591 = vmatpush1.msra.mxu0 0.0
      %1592 = vmatprep.subr.mxu0 0.0
      %1593 = vmatpush1.msra.mxu0 0.0
      %1594 = vmatprep.subr.mxu0 0.0
      %1595 = vmatpush1.msra.mxu0 0.0
      %1596 = vmatprep.subr.mxu0 0.0
      %1597 = vmatpush1.msra.mxu0 0.0
      %1598 = vmatprep.subr.mxu0 0.0
      %1599 = vmatpush1.msra.mxu0 0.0
      %1600 = vmatprep.subr.mxu0 0.0
      %1601 = vmatpush1.msra.mxu0 0.0
      %1602 = vmatprep.subr.mxu0 0.0
      %1603 = vmatpush1.msra.mxu0 0.0
      %1604 = vmatprep.subr.mxu0 0.0
      %1605 = vmatpush1.msra.mxu0 0.0
      %1606 = vmatprep.subr.mxu0 0.0
      %1607 = vmatpush1.msra.mxu0 0.0
      %1608 = vmatprep.subr.mxu0 0.0
      %1609 = vmatpush1.msra.mxu0 0.0
      %1610 = vmatprep.subr.mxu0 0.0
      %1611 = vmatpush1.msra.mxu0 0.0
      %1612 = vmatprep.mubr.f32.mxu0 0.0
      %1613 = vmatmul.mubr.f32.gmra.mrb[0].mxu0 %v1543
      %v1614 = vpop.f32.mrb[0].mxu0
      %v1615 = vadd.f32 0.0, %v1614
      %v1616 = vpop.f32.mrb[0].mxu0
      %1617 = vmatprep.mubr.f32.mxu0 0.0
      %1618 = vmatmul.mubr.f32.gmra.mrb[0].mxu0 %v1546
      %v1619 = vpop.f32.mrb[0].mxu0
      %v1620 = vadd.f32 0.0, %v1619
      %v1621 = vpop.f32.mrb[0].mxu0
      %1622 = vdwg.mxu0
      %v1623 = vadd.f32 %v1528, %v1615
      %v1624 = vadd.f32 %v1529, %v1620
      %v1625 = vld [vmem:[%s5 + $0x2] sm:$0x1]
      %v1626 = vlaneseq
      %v1627 = vshrl.u32 %v1626, 7
      %v1628 = vsub.s32 0, %v1627
      %v1629 = vrot.slane %v1625, %v1628
      %v1630 = vmul.f32 %v1623, %v1629
      %v1631 = vmul.f32 %v1624, %v1629
      %v1632 = vld [vmem:[%s6 + $0x2] sm:$0x1]
      %v1633 = vlaneseq
      %v1634 = vshrl.u32 %v1633, 7
      %v1635 = vsub.s32 0, %v1634
      %v1636 = vrot.slane %v1632, %v1635
      %v1637 = vadd.f32 %v1630, %v1636
      %v1638 = vadd.f32 %v1631, %v1636
      %v1639 = vtanh.pop %v1637
      %v1640 = vtanh.pop %v1638
      %1641 = vst.msk [vmem:[#allocation5 + $0x8] sm:$0xf] %vm299, %v1639
      %1642 = vst.msk [vmem:[#allocation5 + $0x18] sm:$0xf] %vm299, %v1640
      %s1643 = scalar_lea.vmem [#allocation5], 7
      %v1644 = vld [vmem:[%s1643] ss:$2 sm:$0xff]
      %s1645 = scalar_lea.vmem [#allocation5], 23
      %v1646 = vld [vmem:[%s1645] ss:$2 sm:$0xff]
      %v1647 = vld [vmem:[%s4] sm:$0xff]
      %v1648 = vld [vmem:[%s4 + $0x8] sm:$0xff]
      %v1649 = vld [vmem:[%s4 + $0x10] sm:$0xff]
      %v1650 = vld [vmem:[%s4 + $0x18] sm:$0xff]
      %v1651 = vld [vmem:[%s4 + $0x20] sm:$0xff]
      %v1652 = vld [vmem:[%s4 + $0x28] sm:$0xff]
      %v1653 = vld [vmem:[%s4 + $0x30] sm:$0xff]
      %v1654 = vld [vmem:[%s4 + $0x38] sm:$0xff]
      %s1655 = scalar_lea.vmem [#allocation5], 8
      %v1656 = vld [vmem:[%s1655] ss:$2 sm:$0xff]
      %s1657 = scalar_lea.vmem [#allocation5], 24
      %v1658 = vld [vmem:[%s1657] ss:$2 sm:$0xff]
      %v1659 = vld [vmem:[%s4 + $0x40] sm:$0xff]
      %v1660 = vld [vmem:[%s4 + $0x48] sm:$0xff]
      %v1661 = vld [vmem:[%s4 + $0x50] sm:$0xff]
      %v1662 = vld [vmem:[%s4 + $0x58] sm:$0xff]
      %v1663 = vld [vmem:[%s4 + $0x60] sm:$0xff]
      %v1664 = vld [vmem:[%s4 + $0x68] sm:$0xff]
      %v1665 = vld [vmem:[%s4 + $0x70] sm:$0xff]
      %v1666 = vld [vmem:[%s4 + $0x78] sm:$0xff]
      %v1668 = vsel %vm282, %v1656, 0
      %v1671 = vsel %vm282, %v1658, 0
      %1673 = vmatprep.subr.mxu0 0.0
      %1674 = vmatpush1.msra.mxu0 %v1659
      %1675 = vmatprep.subr.mxu0 0.0
      %1676 = vmatpush1.msra.mxu0 %v1660
      %1677 = vmatprep.subr.mxu0 0.0
      %1678 = vmatpush1.msra.mxu0 %v1661
      %1679 = vmatprep.subr.mxu0 0.0
      %1680 = vmatpush1.msra.mxu0 %v1662
      %1681 = vmatprep.subr.mxu0 0.0
      %1682 = vmatpush1.msra.mxu0 %v1663
      %1683 = vmatprep.subr.mxu0 0.0
      %1684 = vmatpush1.msra.mxu0 %v1664
      %1685 = vmatprep.subr.mxu0 0.0
      %1686 = vmatpush1.msra.mxu0 %v1665
      %1687 = vmatprep.subr.mxu0 0.0
      %1688 = vmatpush1.msra.mxu0 %v1666
      %1689 = vmatprep.subr.mxu0 0.0
      %1690 = vmatpush1.msra.mxu0 0.0
      %1691 = vmatprep.subr.mxu0 0.0
      %1692 = vmatpush1.msra.mxu0 0.0
      %1693 = vmatprep.subr.mxu0 0.0
      %1694 = vmatpush1.msra.mxu0 0.0
      %1695 = vmatprep.subr.mxu0 0.0
      %1696 = vmatpush1.msra.mxu0 0.0
      %1697 = vmatprep.subr.mxu0 0.0
      %1698 = vmatpush1.msra.mxu0 0.0
      %1699 = vmatprep.subr.mxu0 0.0
      %1700 = vmatpush1.msra.mxu0 0.0
      %1701 = vmatprep.subr.mxu0 0.0
      %1702 = vmatpush1.msra.mxu0 0.0
      %1703 = vmatprep.subr.mxu0 0.0
      %1704 = vmatpush1.msra.mxu0 0.0
      %1705 = vmatprep.subr.mxu0 0.0
      %1706 = vmatpush1.msra.mxu0 0.0
      %1707 = vmatprep.subr.mxu0 0.0
      %1708 = vmatpush1.msra.mxu0 0.0
      %1709 = vmatprep.subr.mxu0 0.0
      %1710 = vmatpush1.msra.mxu0 0.0
      %1711 = vmatprep.subr.mxu0 0.0
      %1712 = vmatpush1.msra.mxu0 0.0
      %1713 = vmatprep.subr.mxu0 0.0
      %1714 = vmatpush1.msra.mxu0 0.0
      %1715 = vmatprep.subr.mxu0 0.0
      %1716 = vmatpush1.msra.mxu0 0.0
      %1717 = vmatprep.subr.mxu0 0.0
      %1718 = vmatpush1.msra.mxu0 0.0
      %1719 = vmatprep.subr.mxu0 0.0
      %1720 = vmatpush1.msra.mxu0 0.0
      %1721 = vmatprep.subr.mxu0 0.0
      %1722 = vmatpush1.msra.mxu0 0.0
      %1723 = vmatprep.subr.mxu0 0.0
      %1724 = vmatpush1.msra.mxu0 0.0
      %1725 = vmatprep.subr.mxu0 0.0
      %1726 = vmatpush1.msra.mxu0 0.0
      %1727 = vmatprep.subr.mxu0 0.0
      %1728 = vmatpush1.msra.mxu0 0.0
      %1729 = vmatprep.subr.mxu0 0.0
      %1730 = vmatpush1.msra.mxu0 0.0
      %1731 = vmatprep.subr.mxu0 0.0
      %1732 = vmatpush1.msra.mxu0 0.0
      %1733 = vmatprep.subr.mxu0 0.0
      %1734 = vmatpush1.msra.mxu0 0.0
      %1735 = vmatprep.subr.mxu0 0.0
      %1736 = vmatpush1.msra.mxu0 0.0
      %1737 = vmatprep.mubr.f32.mxu0 0.0
      %1738 = vmatmul.mubr.f32.gmra.mrb[0].mxu0 %v1668
      %v1739 = vpop.f32.mrb[0].mxu0
      %v1740 = vadd.f32 0.0, %v1739
      %v1741 = vpop.f32.mrb[0].mxu0
      %1742 = vmatprep.mubr.f32.mxu0 0.0
      %1743 = vmatmul.mubr.f32.gmra.mrb[0].mxu0 %v1671
      %v1744 = vpop.f32.mrb[0].mxu0
      %v1745 = vadd.f32 0.0, %v1744
      %v1746 = vpop.f32.mrb[0].mxu0
      %1747 = vdwg.mxu0
      %v1749 = vsel %vm282, %v1644, 0
      %v1752 = vsel %vm282, %v1646, 0
      %1754 = vmatprep.subr.mxu0 0.0
      %1755 = vmatpush1.msra.mxu0 %v1647
      %1756 = vmatprep.subr.mxu0 0.0
      %1757 = vmatpush1.msra.mxu0 %v1648
      %1758 = vmatprep.subr.mxu0 0.0
      %1759 = vmatpush1.msra.mxu0 %v1649
      %1760 = vmatprep.subr.mxu0 0.0
      %1761 = vmatpush1.msra.mxu0 %v1650
      %1762 = vmatprep.subr.mxu0 0.0
      %1763 = vmatpush1.msra.mxu0 %v1651
      %1764 = vmatprep.subr.mxu0 0.0
      %1765 = vmatpush1.msra.mxu0 %v1652
      %1766 = vmatprep.subr.mxu0 0.0
      %1767 = vmatpush1.msra.mxu0 %v1653
      %1768 = vmatprep.subr.mxu0 0.0
      %1769 = vmatpush1.msra.mxu0 %v1654
      %1770 = vmatprep.subr.mxu0 0.0
      %1771 = vmatpush1.msra.mxu0 0.0
      %1772 = vmatprep.subr.mxu0 0.0
      %1773 = vmatpush1.msra.mxu0 0.0
      %1774 = vmatprep.subr.mxu0 0.0
      %1775 = vmatpush1.msra.mxu0 0.0
      %1776 = vmatprep.subr.mxu0 0.0
      %1777 = vmatpush1.msra.mxu0 0.0
      %1778 = vmatprep.subr.mxu0 0.0
      %1779 = vmatpush1.msra.mxu0 0.0
      %1780 = vmatprep.subr.mxu0 0.0
      %1781 = vmatpush1.msra.mxu0 0.0
      %1782 = vmatprep.subr.mxu0 0.0
      %1783 = vmatpush1.msra.mxu0 0.0
      %1784 = vmatprep.subr.mxu0 0.0
      %1785 = vmatpush1.msra.mxu0 0.0
      %1786 = vmatprep.subr.mxu0 0.0
      %1787 = vmatpush1.msra.mxu0 0.0
      %1788 = vmatprep.subr.mxu0 0.0
      %1789 = vmatpush1.msra.mxu0 0.0
      %1790 = vmatprep.subr.mxu0 0.0
      %1791 = vmatpush1.msra.mxu0 0.0
      %1792 = vmatprep.subr.mxu0 0.0
      %1793 = vmatpush1.msra.mxu0 0.0
      %1794 = vmatprep.subr.mxu0 0.0
      %1795 = vmatpush1.msra.mxu0 0.0
      %1796 = vmatprep.subr.mxu0 0.0
      %1797 = vmatpush1.msra.mxu0 0.0
      %1798 = vmatprep.subr.mxu0 0.0
      %1799 = vmatpush1.msra.mxu0 0.0
      %1800 = vmatprep.subr.mxu0 0.0
      %1801 = vmatpush1.msra.mxu0 0.0
      %1802 = vmatprep.subr.mxu0 0.0
      %1803 = vmatpush1.msra.mxu0 0.0
      %1804 = vmatprep.subr.mxu0 0.0
      %1805 = vmatpush1.msra.mxu0 0.0
      %1806 = vmatprep.subr.mxu0 0.0
      %1807 = vmatpush1.msra.mxu0 0.0
      %1808 = vmatprep.subr.mxu0 0.0
      %1809 = vmatpush1.msra.mxu0 0.0
      %1810 = vmatprep.subr.mxu0 0.0
      %1811 = vmatpush1.msra.mxu0 0.0
      %1812 = vmatprep.subr.mxu0 0.0
      %1813 = vmatpush1.msra.mxu0 0.0
      %1814 = vmatprep.subr.mxu0 0.0
      %1815 = vmatpush1.msra.mxu0 0.0
      %1816 = vmatprep.subr.mxu0 0.0
      %1817 = vmatpush1.msra.mxu0 0.0
      %1818 = vmatprep.mubr.f32.mxu0 0.0
      %1819 = vmatmul.mubr.f32.gmra.mrb[0].mxu0 %v1749
      %v1820 = vpop.f32.mrb[0].mxu0
      %v1821 = vadd.f32 %v1740, %v1820
      %v1822 = vpop.f32.mrb[0].mxu0
      %1823 = vmatprep.mubr.f32.mxu0 0.0
      %1824 = vmatmul.mubr.f32.gmra.mrb[0].mxu0 %v1752
      %v1825 = vpop.f32.mrb[0].mxu0
      %v1826 = vadd.f32 %v1745, %v1825
      %v1827 = vpop.f32.mrb[0].mxu0
      %1828 = vdwg.mxu0
      %s1829 = scalar_lea.vmem [#allocation5], 9
      %v1830 = vld [vmem:[%s1829] ss:$2 sm:$0xff]
      %s1831 = scalar_lea.vmem [#allocation5], 25
      %v1832 = vld [vmem:[%s1831] ss:$2 sm:$0xff]
      %v1833 = vld [vmem:[%s4 + $0x80] sm:$0xff]
      %v1834 = vld [vmem:[%s4 + $0x88] sm:$0xff]
      %v1835 = vld [vmem:[%s4 + $0x90] sm:$0xff]
      %v1836 = vld [vmem:[%s4 + $0x98] sm:$0xff]
      %v1837 = vld [vmem:[%s4 + $0xa0] sm:$0xff]
      %v1838 = vld [vmem:[%s4 + $0xa8] sm:$0xff]
      %v1839 = vld [vmem:[%s4 + $0xb0] sm:$0xff]
      %v1840 = vld [vmem:[%s4 + $0xb8] sm:$0xff]
      %v1842 = vsel %vm282, %v1830, 0
      %v1845 = vsel %vm282, %v1832, 0
      %1847 = vmatprep.subr.mxu0 0.0
      %1848 = vmatpush1.msra.mxu0 %v1833
      %1849 = vmatprep.subr.mxu0 0.0
      %1850 = vmatpush1.msra.mxu0 %v1834
      %1851 = vmatprep.subr.mxu0 0.0
      %1852 = vmatpush1.msra.mxu0 %v1835
      %1853 = vmatprep.subr.mxu0 0.0
      %1854 = vmatpush1.msra.mxu0 %v1836
      %1855 = vmatprep.subr.mxu0 0.0
      %1856 = vmatpush1.msra.mxu0 %v1837
      %1857 = vmatprep.subr.mxu0 0.0
      %1858 = vmatpush1.msra.mxu0 %v1838
      %1859 = vmatprep.subr.mxu0 0.0
      %1860 = vmatpush1.msra.mxu0 %v1839
      %1861 = vmatprep.subr.mxu0 0.0
      %1862 = vmatpush1.msra.mxu0 %v1840
      %1863 = vmatprep.subr.mxu0 0.0
      %1864 = vmatpush1.msra.mxu0 0.0
      %1865 = vmatprep.subr.mxu0 0.0
      %1866 = vmatpush1.msra.mxu0 0.0
      %1867 = vmatprep.subr.mxu0 0.0
      %1868 = vmatpush1.msra.mxu0 0.0
      %1869 = vmatprep.subr.mxu0 0.0
      %1870 = vmatpush1.msra.mxu0 0.0
      %1871 = vmatprep.subr.mxu0 0.0
      %1872 = vmatpush1.msra.mxu0 0.0
      %1873 = vmatprep.subr.mxu0 0.0
      %1874 = vmatpush1.msra.mxu0 0.0
      %1875 = vmatprep.subr.mxu0 0.0
      %1876 = vmatpush1.msra.mxu0 0.0
      %1877 = vmatprep.subr.mxu0 0.0
      %1878 = vmatpush1.msra.mxu0 0.0
      %1879 = vmatprep.subr.mxu0 0.0
      %1880 = vmatpush1.msra.mxu0 0.0
      %1881 = vmatprep.subr.mxu0 0.0
      %1882 = vmatpush1.msra.mxu0 0.0
      %1883 = vmatprep.subr.mxu0 0.0
      %1884 = vmatpush1.msra.mxu0 0.0
      %1885 = vmatprep.subr.mxu0 0.0
      %1886 = vmatpush1.msra.mxu0 0.0
      %1887 = vmatprep.subr.mxu0 0.0
      %1888 = vmatpush1.msra.mxu0 0.0
      %1889 = vmatprep.subr.mxu0 0.0
      %1890 = vmatpush1.msra.mxu0 0.0
      %1891 = vmatprep.subr.mxu0 0.0
      %1892 = vmatpush1.msra.mxu0 0.0
      %1893 = vmatprep.subr.mxu0 0.0
      %1894 = vmatpush1.msra.mxu0 0.0
      %1895 = vmatprep.subr.mxu0 0.0
      %1896 = vmatpush1.msra.mxu0 0.0
      %1897 = vmatprep.subr.mxu0 0.0
      %1898 = vmatpush1.msra.mxu0 0.0
      %1899 = vmatprep.subr.mxu0 0.0
      %1900 = vmatpush1.msra.mxu0 0.0
      %1901 = vmatprep.subr.mxu0 0.0
      %1902 = vmatpush1.msra.mxu0 0.0
      %1903 = vmatprep.subr.mxu0 0.0
      %1904 = vmatpush1.msra.mxu0 0.0
      %1905 = vmatprep.subr.mxu0 0.0
      %1906 = vmatpush1.msra.mxu0 0.0
      %1907 = vmatprep.subr.mxu0 0.0
      %1908 = vmatpush1.msra.mxu0 0.0
      %1909 = vmatprep.subr.mxu0 0.0
      %1910 = vmatpush1.msra.mxu0 0.0
      %1911 = vmatprep.mubr.f32.mxu0 0.0
      %1912 = vmatmul.mubr.f32.gmra.mrb[0].mxu0 %v1842
      %v1913 = vpop.f32.mrb[0].mxu0
      %v1914 = vadd.f32 0.0, %v1913
      %v1915 = vpop.f32.mrb[0].mxu0
      %1916 = vmatprep.mubr.f32.mxu0 0.0
      %1917 = vmatmul.mubr.f32.gmra.mrb[0].mxu0 %v1845
      %v1918 = vpop.f32.mrb[0].mxu0
      %v1919 = vadd.f32 0.0, %v1918
      %v1920 = vpop.f32.mrb[0].mxu0
      %1921 = vdwg.mxu0
      %v1922 = vadd.f32 %v1821, %v1914
      %v1923 = vadd.f32 %v1826, %v1919
      %v1924 = vld [vmem:[%s5 + $0x3] sm:$0x1]
      %v1925 = vlaneseq
      %v1926 = vshrl.u32 %v1925, 7
      %v1927 = vsub.s32 0, %v1926
      %v1928 = vrot.slane %v1924, %v1927
      %v1929 = vmul.f32 %v1922, %v1928
      %v1930 = vmul.f32 %v1923, %v1928
      %v1931 = vld [vmem:[%s6 + $0x3] sm:$0x1]
      %v1932 = vlaneseq
      %v1933 = vshrl.u32 %v1932, 7
      %v1934 = vsub.s32 0, %v1933
      %v1935 = vrot.slane %v1931, %v1934
      %v1936 = vadd.f32 %v1929, %v1935
      %v1937 = vadd.f32 %v1930, %v1935
      %v1938 = vtanh.pop %v1936
      %v1939 = vtanh.pop %v1937
      %v1940 = vmax.f32 %v1938, 0.0
      %v1941 = vmax.f32 %v1939, 0.0
      %1942 = vst.msk [vmem:[%s280] sm:$0xff] %vm282, %v1940
      %1943 = vst.msk [vmem:[%s280 + $0x8] sm:$0xff] %vm282, %v1941
      %s1944 = smul.u32 2, %s18
      %p1945 = scmp.lt.s32.totalorder %s1944, 3
      %s1946 = scalar_select %p1945, %s1944, 3
      %s1947 = smul.addr %s1946, 8
      %s1948 = scalar_lea.vmem %s7, %s1947
      // Predicated region
      $region49: #{conv_layer_forward.1} parent=47 // pred_check
        %p1949 = pneg %p188
      $region50: #{conv_layer_forward.1} parent=47 // pred_check_branch
        %1951 = sbr.rel (%p1949) target = $region52
      $region51: #{conv_layer_forward.1} parent=47 // pred_region
        %s1952 = smul.u32 2, %s18
      $region52: #{conv_layer_forward.1} parent=47 // pred_fallthru
        _
    $region48: #{conv_layer_forward.1} parent=5 // pred_fallthru
      _
    %p1953 = scmp.le.s32.totalorder 2, %s13
    // Predicated region
    $region53: #{conv_layer_forward.1} parent=5 // pred_check
      %p1954 = pneg %p1953
    $region54: #{conv_layer_forward.1} parent=5 // pred_check_branch
      %1956 = sbr.rel (%p1954) target = $region56
    $region55: #{conv_layer_forward.1} parent=5 // pred_region
      %s1957 = ssub.s32 %s13, 2
      // Predicated region
      $region57: #{conv_layer_forward.1} parent=55 // pred_check
        %p1958 = pneg %p194
      $region58: #{conv_layer_forward.1} parent=55 // pred_check_branch
        %1960 = sbr.rel (%p1958) target = $region60
      $region59: #{conv_layer_forward.1} parent=55 // pred_region
        %s1961 = smul.u32 2, %s19
        %p1962 = scmp.lt.s32.totalorder %s1961, 3
        %s1963 = scalar_select %p1962, %s1961, 3
        %s1964 = smul.addr %s1963, 8
        %s1965 = scalar_lea.vmem %s7, %s1964
      $region60: #{conv_layer_forward.1} parent=55 // pred_fallthru
        _
    $region56: #{conv_layer_forward.1} parent=5 // pred_fallthru
      _
  $region6: #{conv_layer_forward.1} parent=0 // loop_footer
    %s17 = sadd.s32 1, %s13
  $region7: #{conv_layer_forward.1} parent=0 // loop_footer_branch
    %12 = sbr.rel target = $region3
  $region8: #{conv_layer_forward.1} parent=0 // loop_exit
    _

</llo_original>
